<compile_context>
chip_gen: v7x
topology: tpu7x:2x2x1
jax: 0.10.0
libtpu: 0.0.40
codegen_flags: <defaults>
</compile_context>

<pallas_src>
import functools

import jax
import jax.numpy as jnp
from jax.experimental import pallas as pl
from jax.experimental.pallas import tpu as pltpu

FEATURE_V_N = 256   # self.z_dim
F_TILE = 128        # output-column tile for the encoders (2 parallel blocks)

# Streaming tile sizes (multiples of 128) and explicit scoped-VMEM budget.
#   encoder  weight tile: (TK, 128)  int8 = 2 MiB  (x2 double-buffer)
#   generator weight tile: (512, TN) int8 = 4 MiB  (x2 double-buffer)
_TK_DEFAULT = 16384   # K (= H*W) tile for the encoders
_TN_DEFAULT = 8192    # N (= H*W) tile for the generator
_VMEM_LIMIT = 40 * 1024 * 1024   # < v7x physical 64 MiB, > v5e/v6e defaults


def _round_up(x, m):
    return ((x + m - 1) // m) * m


def _tiling(full, cap):
    """Return (tile, padded): tile is a multiple of 128, tile <= cap, and
    tile divides padded >= full (padding < 128 per grid step)."""
    full_p = _round_up(max(full, 1), 128)
    if full_p <= cap:
        return full_p, full_p
    n = -(-full_p // cap)
    tile = _round_up(-(-full_p // n), 128)
    return tile, tile * n


def _pick_tile(full, cap):
    """Largest multiple-of-128 divisor of `full` (itself a multiple of 128)
    that is <= cap.  Always terminates at >= 128, never the full extent."""
    if full <= cap:
        return full
    t = (cap // 128) * 128
    while full % t:
        t -= 128
    return t


def _quantize_per_col(w):
    """Symmetric per-output-channel int8 quantization with f32 scales."""
    amax = jnp.max(jnp.abs(w), axis=0, keepdims=True)
    scale = jnp.where(amax > 0, amax / 127.0, 1.0).astype(jnp.float32)
    q = jnp.clip(jnp.round(w / scale), -127, 127).astype(jnp.int8)
    return q, scale


# ----------------------------------------------------------------------------
# Kernel 1: chara encoder — (F-parallel, K-reduction) flatten -> linear -> ReLU
# TODO(synk): EfficientNetEncoder (MBConv stack) has no provided definition;
#             stand-in is a single linear + ReLU projection to FEATURE_V_N.
# ----------------------------------------------------------------------------
def _linear_relu_kernel(x_ref, w_ref, s_ref, b_ref, o_ref):
    k = pl.program_id(1)

    @pl.when(k == 0)
    def _():
        o_ref[...] = jnp.zeros_like(o_ref)

    # int8 weight tile -> bf16 (exact), MXU dot, f32 accumulate in the
    # resident output block (its block index is constant across k).
    o_ref[...] += jnp.dot(x_ref[...], w_ref[...].astype(jnp.bfloat16),
                          preferred_element_type=jnp.float32)

    @pl.when(k == pl.num_programs(1) - 1)
    def _():
        o_ref[...] = jnp.maximum(o_ref[...] * s_ref[...] + b_ref[...], 0.0)


def encoder_call(x, w_q, w_scale, b, *, tk=_TK_DEFAULT):
    # x: (M, K) bf16 (K already padded to the weight's K),
    # w_q: (K, F) int8, w_scale/b: (1, F) f32  ->  (M, F) f32
    M, K = x.shape
    F = w_q.shape[1]
    tk = _pick_tile(K, tk)
    return pl.pallas_call(
        _linear_relu_kernel,
        out_shape=jax.ShapeDtypeStruct((M, F), jnp.float32),
        grid=(F // F_TILE, K // tk),
        in_specs=[
            pl.BlockSpec((M, tk), lambda f, k: (0, k)),        # activations
            pl.BlockSpec((tk, F_TILE), lambda f, k: (k, f)),   # streamed int8 w
            pl.BlockSpec((1, F_TILE), lambda f, k: (0, f)),    # per-col scale
            pl.BlockSpec((1, F_TILE), lambda f, k: (0, f)),    # bias
        ],
        out_specs=pl.BlockSpec((M, F_TILE), lambda f, k: (0, f)),
        compiler_params=pltpu.CompilerParams(
            dimension_semantics=("parallel", "arbitrary"),
            vmem_limit_bytes=_VMEM_LIMIT),
    )(x, w_q, w_scale, b)


# ----------------------------------------------------------------------------
# Kernel 2: style encoder — all P pairs at once.
#   Rows of the LHS are (b, p) pairs; each row stores [img0 | img1] of length
#   2*K, so the two images are addressed as two lane-windows of the same row.
#   diff = img1 - img0 is computed on the VPU per K-tile, then matmul'd and
#   accumulated — style_w is streamed from HBM exactly once for all P pairs.
# ----------------------------------------------------------------------------
def _diff_linear_relu_kernel(x0_ref, x1_ref, w_ref, s_ref, b_ref, o_ref):
    k = pl.program_id(1)

    @pl.when(k == 0)
    def _():
        o_ref[...] = jnp.zeros_like(o_ref)

    diff = x1_ref[...] - x0_ref[...]                         # bf16 VPU diff
    o_ref[...] += jnp.dot(diff, w_ref[...].astype(jnp.bfloat16),
                          preferred_element_type=jnp.float32)

    @pl.when(k == pl.num_programs(1) - 1)
    def _():
        o_ref[...] = jnp.maximum(o_ref[...] * s_ref[...] + b_ref[...], 0.0)


def style_encoder_call(pairs_flat, w_q, w_scale, b, *, tk=_TK_DEFAULT):
    # pairs_flat: (M, 2*K) bf16, row m = [img0 flat | img1 flat] of pair m.
    M, two_k = pairs_flat.shape
    K = two_k // 2
    F = w_q.shape[1]
    tk = _pick_tile(K, tk)
    nk = K // tk
    return pl.pallas_call(
        _diff_linear_relu_kernel,
        out_shape=jax.ShapeDtypeStruct((M, F), jnp.float32),
        grid=(F // F_TILE, nk),
        in_specs=[
            pl.BlockSpec((M, tk), lambda f, k: (0, k)),         # image-0 window
            pl.BlockSpec((M, tk), lambda f, k: (0, k + nk)),    # image-1 window
            pl.BlockSpec((tk, F_TILE), lambda f, k: (k, f)),    # streamed int8 w
            pl.BlockSpec((1, F_TILE), lambda f, k: (0, f)),
            pl.BlockSpec((1, F_TILE), lambda f, k: (0, f)),
        ],
        out_specs=pl.BlockSpec((M, F_TILE), lambda f, k: (0, f)),
        compiler_params=pltpu.CompilerParams(
            dimension_semantics=("parallel", "arbitrary"),
            vmem_limit_bytes=_VMEM_LIMIT),
    )(pairs_flat, pairs_flat, w_q, w_scale, b)


# ----------------------------------------------------------------------------
# Kernel 3: generator + binarization — N-tiled over H*W, "parallel" grid.
# TODO(synk): Generator(gen_settings['network']) definition not provided;
#             stand-in: res = [chara | alpha*style_mean] @ [Wc; Ws] + b.
#             BinarizationWithDerivative.forward == (res > 0) + 0.0 (exact).
# ----------------------------------------------------------------------------
def _generator_kernel(lhs_ref, w_ref, s_ref, b_ref, res_ref, bin_ref):
    y = jnp.dot(lhs_ref[...], w_ref[...].astype(jnp.bfloat16),
                preferred_element_type=jnp.float32) * s_ref[...] + b_ref[...]
    res_ref[...] = y
    bin_ref[...] = (y > 0).astype(jnp.float32)


def generator_call(lhs, w_q, w_scale, b, *, tn=_TN_DEFAULT):
    # lhs: (B, 2F) bf16 = [chara | alpha*style_mean] (resident),
    # w_q: (2F, N) int8 (streamed), w_scale/b: (1, N) f32
    #   -> res (B, N) f32, bin (B, N) f32
    B, two_f = lhs.shape
    N = w_q.shape[1]
    tn = _pick_tile(N, tn)
    return pl.pallas_call(
        _generator_kernel,
        out_shape=(
            jax.ShapeDtypeStruct((B, N), jnp.float32),
            jax.ShapeDtypeStruct((B, N), jnp.float32),
        ),
        grid=(N // tn,),
        in_specs=[
            pl.BlockSpec((B, two_f), lambda j: (0, 0)),     # resident LHS
            pl.BlockSpec((two_f, tn), lambda j: (0, j)),    # streamed int8 w
            pl.BlockSpec((1, tn), lambda j: (0, j)),        # per-col scale
            pl.BlockSpec((1, tn), lambda j: (0, j)),        # bias
        ],
        out_specs=(
            pl.BlockSpec((B, tn), lambda j: (0, j)),
            pl.BlockSpec((B, tn), lambda j: (0, j)),
        ),
        compiler_params=pltpu.CompilerParams(
            dimension_semantics=("parallel",),
            vmem_limit_bytes=_VMEM_LIMIT),
    )(lhs, w_q, w_scale, b)


# ----------------------------------------------------------------------------
# MyPSP forward (ver=1, for_chara_training=False, for_style_training=False)
# ----------------------------------------------------------------------------
def init_params(H, W, *, tk=_TK_DEFAULT, tn=_TN_DEFAULT):
    HW = H * W
    _, k_pad = _tiling(HW, tk)   # encoder reduction (K) axis, zero-padded
    _, n_pad = _tiling(HW, tn)   # generator output (N) axis, zero-padded
    keys = jax.random.split(jax.random.PRNGKey(0), 6)
    s = 0.02

    chara_w = s * jax.random.normal(keys[0], (HW, FEATURE_V_N), jnp.float32)
    style_w = s * jax.random.normal(keys[2], (HW, FEATURE_V_N), jnp.float32)
    wc = s * jax.random.normal(keys[4], (FEATURE_V_N, HW), jnp.float32)
    ws = s * jax.random.normal(keys[5], (FEATURE_V_N, HW), jnp.float32)
    gen_w = jnp.concatenate([wc, ws], axis=0)                 # (2F, HW) fused

    # Zero-pad the pixel axes so every kernel gets divisible, >=128 tiles.
    chara_w = jnp.pad(chara_w, ((0, k_pad - HW), (0, 0)))
    style_w = jnp.pad(style_w, ((0, k_pad - HW), (0, 0)))
    gen_w = jnp.pad(gen_w, ((0, 0), (0, n_pad - HW)))

    # int8 storage + per-output-channel f32 scales (dequant after MXU accum).
    chara_q, chara_s = _quantize_per_col(chara_w)
    style_q, style_s = _quantize_per_col(style_w)
    gen_q, gen_s = _quantize_per_col(gen_w)

    return {
        "chara_w": chara_q, "chara_scale": chara_s,
        "chara_b": s * jax.random.normal(keys[1], (1, FEATURE_V_N), jnp.float32),
        "style_w": style_q, "style_scale": style_s,
        "style_b": s * jax.random.normal(keys[3], (1, FEATURE_V_N), jnp.float32),
        "gen_w": gen_q, "gen_scale": gen_s,
        "gen_b": jnp.zeros((1, n_pad), jnp.float32),
    }


@functools.partial(jax.jit, static_argnames=("use_bin",))
def mypsp_forward(params, chara_images, style_pairs, alpha, use_bin=True):
    # TODO(synk): for_chara_training / for_style_training branches not needed
    #             for the default config and are not implemented.
    B, C, H, W = chara_images.shape            # NCHW, C == 1
    HW = C * H * W
    P = style_pairs.shape[1]
    F = FEATURE_V_N

    k_pad = params["chara_w"].shape[0]
    n_pad = params["gen_w"].shape[1]

    # chara_images = self.chara_encoder(chara_images)
    x = chara_images.reshape(B, HW).astype(jnp.bfloat16)
    x = jnp.pad(x, ((0, 0), (0, k_pad - HW)))
    chara_feats = encoder_call(x, params["chara_w"], params["chara_scale"],
                               params["chara_b"])                   # (B, F)

    # style_pairs[:, :, 1] - style_pairs[:, :, 0] then encode each pair:
    # P pairs are folded into the matmul M dim; the diff is taken inside the
    # kernel from two lane-windows of the same row.
    pairs = style_pairs.reshape(B * P, 2, HW).astype(jnp.bfloat16)
    pairs = jnp.pad(pairs, ((0, 0), (0, 0), (0, k_pad - HW)))
    pairs_flat = pairs.reshape(B * P, 2 * k_pad)
    enc_flat = style_encoder_call(pairs_flat, params["style_w"],
                                  params["style_scale"], params["style_b"])
    style_pairs_enc = enc_flat.reshape(B, P, F)                 # stack(dim=1)
    style_mean = style_pairs_enc.mean(axis=1)                   # (B, F), tiny

    # res = self.style_gen(chara_images, style_pairs_, alpha)
    # alpha is applied to the small (B, F) style feature before the dot.
    lhs = jnp.concatenate(
        [chara_feats, alpha * style_mean], axis=1).astype(jnp.bfloat16)
    res_flat, bin_flat = generator_call(lhs, params["gen_w"],
                                        params["gen_scale"], params["gen_b"])

    res = res_flat[:, :HW].reshape(B, 1, H, W)
    if use_bin:
        res_bin = bin_flat[:, :HW].reshape(B, 1, H, W)
        return chara_feats, style_pairs_enc, res, res_bin
    return chara_feats, style_pairs_enc, res


if __name__ == "__main__":
    B, H, W, P = 2, 16, 16, 3
    params = init_params(H, W)

    key = jax.random.PRNGKey(0)
    k1, k2 = jax.random.split(key)
    chara_images = jax.random.normal(k1, (B, 1, H, W), jnp.float32)
    style_pairs = jax.random.normal(k2, (B, P, 2, 1, H, W), jnp.float32)
    alpha = 0.7

    out = mypsp_forward(params, chara_images, style_pairs, alpha, use_bin=True)
    out = jax.block_until_ready(out)

    chara_feats, style_enc, res, res_bin = out
    assert chara_feats.shape == (B, FEATURE_V_N)
    assert style_enc.shape == (B, P, FEATURE_V_N)
    assert res.shape == (B, 1, H, W)
    assert res_bin.shape == (B, 1, H, W)
    assert bool(jnp.all((res_bin == 0) | (res_bin == 1)))
    print("KERNEL_OK")
</pallas_src>

<mosaic_0001>
module attributes {stable_mosaic.version = 11 : i64} {
  func.func @_diff_linear_relu_kernel(%arg0: i32, %arg1: i32, %arg2: memref<6x256xbf16, #tpu.memory_space<vmem>>, %arg3: memref<6x256xbf16, #tpu.memory_space<vmem>>, %arg4: memref<256x128xi8, #tpu.memory_space<vmem>>, %arg5: memref<1x128xf32, #tpu.memory_space<vmem>>, %arg6: memref<1x128xf32, #tpu.memory_space<vmem>>, %arg7: memref<6x128xf32, #tpu.memory_space<vmem>>) attributes {dimension_semantics = [#tpu.dimension_semantics<parallel>, #tpu.dimension_semantics<arbitrary>], iteration_bounds = array<i64: 2, 1>, scalar_prefetch = 0 : i64, scratch_operands = 0 : i64, tpu.core_type = #tpu.core_type<tc>, window_params = [{transform_indices = @transform_0, window_bounds = array<i64: 6, 256>}, {transform_indices = @transform_1, window_bounds = array<i64: 6, 256>}, {transform_indices = @transform_2, window_bounds = array<i64: 256, 128>}, {transform_indices = @transform_3, window_bounds = array<i64: 1, 128>}, {transform_indices = @transform_4, window_bounds = array<i64: 1, 128>}, {transform_indices = @transform_5, window_bounds = array<i64: 6, 128>}]} {
    %c0_i32 = arith.constant 0 : i32
    %0 = arith.cmpi eq, %arg1, %c0_i32 : i32
    %1 = arith.extui %0 : i1 to i32
    %c0_i32_0 = arith.constant 0 : i32
    %2 = arith.cmpi ne, %1, %c0_i32_0 : i32
    scf.if %2 {
      %cst_12 = arith.constant 0.000000e+00 : f32
      %15 = vector.broadcast %cst_12 : f32 to vector<6x128xf32>
      %c0_13 = arith.constant 0 : index
      %c0_14 = arith.constant 0 : index
      %16 = vector.load %arg7[%c0_13, %c0_14] : memref<6x128xf32, #tpu.memory_space<vmem>>, vector<6x128xf32>
      tpu.vector_store %arg7[%c0_13, %c0_14], %15 {strides = array<i32>} : memref<6x128xf32, #tpu.memory_space<vmem>>, vector<6x128xf32>,
    } else {
    }
    %c0 = arith.constant 0 : index
    %c0_1 = arith.constant 0 : index
    %3 = vector.load %arg3[%c0, %c0_1] : memref<6x256xbf16, #tpu.memory_space<vmem>>, vector<6x256xbf16>
    %c0_2 = arith.constant 0 : index
    %c0_3 = arith.constant 0 : index
    %4 = vector.load %arg2[%c0_2, %c0_3] : memref<6x256xbf16, #tpu.memory_space<vmem>>, vector<6x256xbf16>
    %5 = arith.subf %3, %4 : vector<6x256xbf16>
    %c0_4 = arith.constant 0 : index
    %c0_5 = arith.constant 0 : index
    %6 = vector.load %arg7[%c0_4, %c0_5] : memref<6x128xf32, #tpu.memory_space<vmem>>, vector<6x128xf32>
    %c0_6 = arith.constant 0 : index
    %c0_7 = arith.constant 0 : index
    %7 = vector.load %arg4[%c0_6, %c0_7] : memref<256x128xi8, #tpu.memory_space<vmem>>, vector<256x128xi8>
    %8 = arith.sitofp %7 : vector<256x128xi8> to vector<256x128xbf16>
    %cst = arith.constant dense<0.000000e+00> : vector<6x128xf32>
    %9 = tpu.matmul %5, %8, %cst {dimension_numbers = #tpu.dot_dimension_numbers<[1], [0], [0], [1], [0, 0, 1, 1], [], []>} : vector<6x256xbf16>, vector<256x128xbf16>, vector<6x128xf32> -> vector<6x128xf32>
    %10 = arith.addf %6, %9 : vector<6x128xf32>
    %c0_8 = arith.constant 0 : index
    %c0_9 = arith.constant 0 : index
    %11 = vector.load %arg7[%c0_8, %c0_9] : memref<6x128xf32, #tpu.memory_space<vmem>>, vector<6x128xf32>
    tpu.vector_store %arg7[%c0_8, %c0_9], %10 {strides = array<i32>} : memref<6x128xf32, #tpu.memory_space<vmem>>, vector<6x128xf32>,
    %c0_i32_10 = arith.constant 0 : i32
    %12 = arith.cmpi eq, %arg1, %c0_i32_10 : i32
    %13 = arith.extui %12 : i1 to i32
    %c0_i32_11 = arith.constant 0 : i32
    %14 = arith.cmpi ne, %13, %c0_i32_11 : i32
    scf.if %14 {
      %c0_12 = arith.constant 0 : index
      %c0_13 = arith.constant 0 : index
      %15 = vector.load %arg7[%c0_12, %c0_13] : memref<6x128xf32, #tpu.memory_space<vmem>>, vector<6x128xf32>
      %c0_14 = arith.constant 0 : index
      %c0_15 = arith.constant 0 : index
      %16 = vector.load %arg5[%c0_14, %c0_15] : memref<1x128xf32, #tpu.memory_space<vmem>>, vector<1x128xf32>
      %17 = vector.broadcast %16 : vector<1x128xf32> to vector<6x128xf32>
      %18 = arith.mulf %15, %17 : vector<6x128xf32>
      %c0_16 = arith.constant 0 : index
      %c0_17 = arith.constant 0 : index
      %19 = vector.load %arg6[%c0_16, %c0_17] : memref<1x128xf32, #tpu.memory_space<vmem>>, vector<1x128xf32>
      %20 = vector.broadcast %19 : vector<1x128xf32> to vector<6x128xf32>
      %21 = arith.addf %18, %20 : vector<6x128xf32>
      %cst_18 = arith.constant 0.000000e+00 : f32
      %22 = vector.broadcast %cst_18 : f32 to vector<6x128xf32>
      %23 = arith.maximumf %21, %22 : vector<6x128xf32>
      %c0_19 = arith.constant 0 : index
      %c0_20 = arith.constant 0 : index
      %24 = vector.load %arg7[%c0_19, %c0_20] : memref<6x128xf32, #tpu.memory_space<vmem>>, vector<6x128xf32>
      tpu.vector_store %arg7[%c0_19, %c0_20], %23 {strides = array<i32>} : memref<6x128xf32, #tpu.memory_space<vmem>>, vector<6x128xf32>,
    } else {
    }
    return
  }
  func.func @transform_0(%arg0: i32, %arg1: i32) -> (i32, i32) {
    %c0_i32 = arith.constant 0 : i32
    %c0_i32_0 = arith.constant 0 : i32
    return %c0_i32, %arg1 : i32, i32
  }
  func.func @transform_1(%arg0: i32, %arg1: i32) -> (i32, i32) {
    %c1_i32 = arith.constant 1 : i32
    %0 = arith.addi %arg1, %c1_i32 : i32
    %c0_i32 = arith.constant 0 : i32
    %c0_i32_0 = arith.constant 0 : i32
    return %c0_i32, %0 : i32, i32
  }
  func.func @transform_2(%arg0: i32, %arg1: i32) -> (i32, i32) {
    %c0_i32 = arith.constant 0 : i32
    return %arg1, %arg0 : i32, i32
  }
  func.func @transform_3(%arg0: i32, %arg1: i32) -> (i32, i32) {
    %c0_i32 = arith.constant 0 : i32
    %c0_i32_0 = arith.constant 0 : i32
    return %c0_i32, %arg0 : i32, i32
  }
  func.func @transform_4(%arg0: i32, %arg1: i32) -> (i32, i32) {
    %c0_i32 = arith.constant 0 : i32
    %c0_i32_0 = arith.constant 0 : i32
    return %c0_i32, %arg0 : i32, i32
  }
  func.func @transform_5(%arg0: i32, %arg1: i32) -> (i32, i32) {
    %c0_i32 = arith.constant 0 : i32
    %c0_i32_0 = arith.constant 0 : i32
    return %c0_i32, %arg0 : i32, i32
  }
}

module attributes {stable_mosaic.version = 11 : i64} {
  func.func @_linear_relu_kernel(%arg0: i32, %arg1: i32, %arg2: memref<2x256xbf16, #tpu.memory_space<vmem>>, %arg3: memref<256x128xi8, #tpu.memory_space<vmem>>, %arg4: memref<1x128xf32, #tpu.memory_space<vmem>>, %arg5: memref<1x128xf32, #tpu.memory_space<vmem>>, %arg6: memref<2x128xf32, #tpu.memory_space<vmem>>) attributes {dimension_semantics = [#tpu.dimension_semantics<parallel>, #tpu.dimension_semantics<arbitrary>], iteration_bounds = array<i64: 2, 1>, scalar_prefetch = 0 : i64, scratch_operands = 0 : i64, tpu.core_type = #tpu.core_type<tc>, window_params = [{transform_indices = @transform_0, window_bounds = array<i64: 2, 256>}, {transform_indices = @transform_1, window_bounds = array<i64: 256, 128>}, {transform_indices = @transform_2, window_bounds = array<i64: 1, 128>}, {transform_indices = @transform_3, window_bounds = array<i64: 1, 128>}, {transform_indices = @transform_4, window_bounds = array<i64: 2, 128>}]} {
    %c0_i32 = arith.constant 0 : i32
    %0 = arith.cmpi eq, %arg1, %c0_i32 : i32
    %1 = arith.extui %0 : i1 to i32
    %c0_i32_0 = arith.constant 0 : i32
    %2 = arith.cmpi ne, %1, %c0_i32_0 : i32
    scf.if %2 {
      %cst_10 = arith.constant 0.000000e+00 : f32
      %13 = vector.broadcast %cst_10 : f32 to vector<2x128xf32>
      %c0_11 = arith.constant 0 : index
      %c0_12 = arith.constant 0 : index
      %14 = vector.load %arg6[%c0_11, %c0_12] : memref<2x128xf32, #tpu.memory_space<vmem>>, vector<2x128xf32>
      tpu.vector_store %arg6[%c0_11, %c0_12], %13 {strides = array<i32>} : memref<2x128xf32, #tpu.memory_space<vmem>>, vector<2x128xf32>,
    } else {
    }
    %c0 = arith.constant 0 : index
    %c0_1 = arith.constant 0 : index
    %3 = vector.load %arg6[%c0, %c0_1] : memref<2x128xf32, #tpu.memory_space<vmem>>, vector<2x128xf32>
    %c0_2 = arith.constant 0 : index
    %c0_3 = arith.constant 0 : index
    %4 = vector.load %arg2[%c0_2, %c0_3] : memref<2x256xbf16, #tpu.memory_space<vmem>>, vector<2x256xbf16>
    %c0_4 = arith.constant 0 : index
    %c0_5 = arith.constant 0 : index
    %5 = vector.load %arg3[%c0_4, %c0_5] : memref<256x128xi8, #tpu.memory_space<vmem>>, vector<256x128xi8>
    %6 = arith.sitofp %5 : vector<256x128xi8> to vector<256x128xbf16>
    %cst = arith.constant dense<0.000000e+00> : vector<2x128xf32>
    %7 = tpu.matmul %4, %6, %cst {dimension_numbers = #tpu.dot_dimension_numbers<[1], [0], [0], [1], [0, 0, 1, 1], [], []>} : vector<2x256xbf16>, vector<256x128xbf16>, vector<2x128xf32> -> vector<2x128xf32>
    %8 = arith.addf %3, %7 : vector<2x128xf32>
    %c0_6 = arith.constant 0 : index
    %c0_7 = arith.constant 0 : index
    %9 = vector.load %arg6[%c0_6, %c0_7] : memref<2x128xf32, #tpu.memory_space<vmem>>, vector<2x128xf32>
    tpu.vector_store %arg6[%c0_6, %c0_7], %8 {strides = array<i32>} : memref<2x128xf32, #tpu.memory_space<vmem>>, vector<2x128xf32>,
    %c0_i32_8 = arith.constant 0 : i32
    %10 = arith.cmpi eq, %arg1, %c0_i32_8 : i32
    %11 = arith.extui %10 : i1 to i32
    %c0_i32_9 = arith.constant 0 : i32
    %12 = arith.cmpi ne, %11, %c0_i32_9 : i32
    scf.if %12 {
      %c0_10 = arith.constant 0 : index
      %c0_11 = arith.constant 0 : index
      %13 = vector.load %arg6[%c0_10, %c0_11] : memref<2x128xf32, #tpu.memory_space<vmem>>, vector<2x128xf32>
      %c0_12 = arith.constant 0 : index
      %c0_13 = arith.constant 0 : index
      %14 = vector.load %arg4[%c0_12, %c0_13] : memref<1x128xf32, #tpu.memory_space<vmem>>, vector<1x128xf32>
      %15 = vector.broadcast %14 : vector<1x128xf32> to vector<2x128xf32>
      %16 = arith.mulf %13, %15 : vector<2x128xf32>
      %c0_14 = arith.constant 0 : index
      %c0_15 = arith.constant 0 : index
      %17 = vector.load %arg5[%c0_14, %c0_15] : memref<1x128xf32, #tpu.memory_space<vmem>>, vector<1x128xf32>
      %18 = vector.broadcast %17 : vector<1x128xf32> to vector<2x128xf32>
      %19 = arith.addf %16, %18 : vector<2x128xf32>
      %cst_16 = arith.constant 0.000000e+00 : f32
      %20 = vector.broadcast %cst_16 : f32 to vector<2x128xf32>
      %21 = arith.maximumf %19, %20 : vector<2x128xf32>
      %c0_17 = arith.constant 0 : index
      %c0_18 = arith.constant 0 : index
      %22 = vector.load %arg6[%c0_17, %c0_18] : memref<2x128xf32, #tpu.memory_space<vmem>>, vector<2x128xf32>
      tpu.vector_store %arg6[%c0_17, %c0_18], %21 {strides = array<i32>} : memref<2x128xf32, #tpu.memory_space<vmem>>, vector<2x128xf32>,
    } else {
    }
    return
  }
  func.func @transform_0(%arg0: i32, %arg1: i32) -> (i32, i32) {
    %c0_i32 = arith.constant 0 : i32
    %c0_i32_0 = arith.constant 0 : i32
    return %c0_i32, %arg1 : i32, i32
  }
  func.func @transform_1(%arg0: i32, %arg1: i32) -> (i32, i32) {
    %c0_i32 = arith.constant 0 : i32
    return %arg1, %arg0 : i32, i32
  }
  func.func @transform_2(%arg0: i32, %arg1: i32) -> (i32, i32) {
    %c0_i32 = arith.constant 0 : i32
    %c0_i32_0 = arith.constant 0 : i32
    return %c0_i32, %arg0 : i32, i32
  }
  func.func @transform_3(%arg0: i32, %arg1: i32) -> (i32, i32) {
    %c0_i32 = arith.constant 0 : i32
    %c0_i32_0 = arith.constant 0 : i32
    return %c0_i32, %arg0 : i32, i32
  }
  func.func @transform_4(%arg0: i32, %arg1: i32) -> (i32, i32) {
    %c0_i32 = arith.constant 0 : i32
    %c0_i32_0 = arith.constant 0 : i32
    return %c0_i32, %arg0 : i32, i32
  }
}

module attributes {stable_mosaic.version = 11 : i64} {
  func.func @_generator_kernel(%arg0: i32, %arg1: memref<2x512xbf16, #tpu.memory_space<vmem>>, %arg2: memref<512x256xi8, #tpu.memory_space<vmem>>, %arg3: memref<1x256xf32, #tpu.memory_space<vmem>>, %arg4: memref<1x256xf32, #tpu.memory_space<vmem>>, %arg5: memref<2x256xf32, #tpu.memory_space<vmem>>, %arg6: memref<2x256xf32, #tpu.memory_space<vmem>>) attributes {dimension_semantics = [#tpu.dimension_semantics<parallel>], iteration_bounds = array<i64: 1>, scalar_prefetch = 0 : i64, scratch_operands = 0 : i64, tpu.core_type = #tpu.core_type<tc>, window_params = [{pipeline_mode = #tpu.pipeline_mode<synchronous>, transform_indices = @transform_0, window_bounds = array<i64: 2, 512>}, {transform_indices = @transform_1, window_bounds = array<i64: 512, 256>}, {transform_indices = @transform_2, window_bounds = array<i64: 1, 256>}, {transform_indices = @transform_3, window_bounds = array<i64: 1, 256>}, {transform_indices = @transform_4, window_bounds = array<i64: 2, 256>}, {transform_indices = @transform_5, window_bounds = array<i64: 2, 256>}]} {
    %c0 = arith.constant 0 : index
    %c0_0 = arith.constant 0 : index
    %0 = vector.load %arg1[%c0, %c0_0] : memref<2x512xbf16, #tpu.memory_space<vmem>>, vector<2x512xbf16>
    %c0_1 = arith.constant 0 : index
    %c0_2 = arith.constant 0 : index
    %1 = vector.load %arg2[%c0_1, %c0_2] : memref<512x256xi8, #tpu.memory_space<vmem>>, vector<512x256xi8>
    %2 = arith.sitofp %1 : vector<512x256xi8> to vector<512x256xbf16>
    %cst = arith.constant dense<0.000000e+00> : vector<2x256xf32>
    %3 = tpu.matmul %0, %2, %cst {dimension_numbers = #tpu.dot_dimension_numbers<[1], [0], [0], [1], [0, 0, 1, 1], [], []>} : vector<2x512xbf16>, vector<512x256xbf16>, vector<2x256xf32> -> vector<2x256xf32>
    %c0_3 = arith.constant 0 : index
    %c0_4 = arith.constant 0 : index
    %4 = vector.load %arg3[%c0_3, %c0_4] : memref<1x256xf32, #tpu.memory_space<vmem>>, vector<1x256xf32>
    %5 = vector.broadcast %4 : vector<1x256xf32> to vector<2x256xf32>
    %6 = arith.mulf %3, %5 : vector<2x256xf32>
    %c0_5 = arith.constant 0 : index
    %c0_6 = arith.constant 0 : index
    %7 = vector.load %arg4[%c0_5, %c0_6] : memref<1x256xf32, #tpu.memory_space<vmem>>, vector<1x256xf32>
    %8 = vector.broadcast %7 : vector<1x256xf32> to vector<2x256xf32>
    %9 = arith.addf %6, %8 : vector<2x256xf32>
    %c0_7 = arith.constant 0 : index
    %c0_8 = arith.constant 0 : index
    %10 = vector.load %arg5[%c0_7, %c0_8] : memref<2x256xf32, #tpu.memory_space<vmem>>, vector<2x256xf32>
    tpu.vector_store %arg5[%c0_7, %c0_8], %9 {strides = array<i32>} : memref<2x256xf32, #tpu.memory_space<vmem>>, vector<2x256xf32>,
    %cst_9 = arith.constant 0.000000e+00 : f32
    %11 = vector.broadcast %cst_9 : f32 to vector<2x256xf32>
    %12 = arith.cmpf ogt, %9, %11 : vector<2x256xf32>
    %13 = arith.extui %12 : vector<2x256xi1> to vector<2x256xi32>
    %14 = arith.sitofp %13 : vector<2x256xi32> to vector<2x256xf32>
    %c0_10 = arith.constant 0 : index
    %c0_11 = arith.constant 0 : index
    %15 = vector.load %arg6[%c0_10, %c0_11] : memref<2x256xf32, #tpu.memory_space<vmem>>, vector<2x256xf32>
    tpu.vector_store %arg6[%c0_10, %c0_11], %14 {strides = array<i32>} : memref<2x256xf32, #tpu.memory_space<vmem>>, vector<2x256xf32>,
    return
  }
  func.func @transform_0(%arg0: i32) -> (i32, i32) {
    %c0_i32 = arith.constant 0 : i32
    %c0_i32_0 = arith.constant 0 : i32
    %c0_i32_1 = arith.constant 0 : i32
    return %c0_i32, %c0_i32_0 : i32, i32
  }
  func.func @transform_1(%arg0: i32) -> (i32, i32) {
    %c0_i32 = arith.constant 0 : i32
    %c0_i32_0 = arith.constant 0 : i32
    return %c0_i32, %arg0 : i32, i32
  }
  func.func @transform_2(%arg0: i32) -> (i32, i32) {
    %c0_i32 = arith.constant 0 : i32
    %c0_i32_0 = arith.constant 0 : i32
    return %c0_i32, %arg0 : i32, i32
  }
  func.func @transform_3(%arg0: i32) -> (i32, i32) {
    %c0_i32 = arith.constant 0 : i32
    %c0_i32_0 = arith.constant 0 : i32
    return %c0_i32, %arg0 : i32, i32
  }
  func.func @transform_4(%arg0: i32) -> (i32, i32) {
    %c0_i32 = arith.constant 0 : i32
    %c0_i32_0 = arith.constant 0 : i32
    return %c0_i32, %arg0 : i32, i32
  }
  func.func @transform_5(%arg0: i32) -> (i32, i32) {
    %c0_i32 = arith.constant 0 : i32
    %c0_i32_0 = arith.constant 0 : i32
    return %c0_i32, %arg0 : i32, i32
  }
}

</mosaic_0001>

<llo_original>
// kernel: mypsp_forward.4
$region0: #{mypsp_forward.4}
  #allocation0 [shape = 'u32[]', space=smem, size = 0x4, offset = 0x4, fixed_abs, tag = 'smem constant byte address 0x4 - core index']
  #allocation1 [shape = 'u32[144,128]{1,0:T(1,128)}', space=vmem, size = 0x12000, scoped, tag = 'internal scratch']
  %s0 = inlined_call_operand.vmem [shape: bf16[6,512], index: 0, kind: input, shape index: {}, may-alias: {0,1}]
  %s1 = inlined_call_operand.vmem [shape: bf16[6,512], index: 1, kind: input, shape index: {}, may-alias: {0,1}]
  %s2 = inlined_call_operand.vmem [shape: s8[256,256], index: 2, kind: input, shape index: {}]
  %s3 = inlined_call_operand.vmem [shape: f32[1,256], index: 3, kind: input, shape index: {}]
  %s4 = inlined_call_operand.vmem [shape: f32[1,256], index: 4, kind: input, shape index: {}]
  %s5 = inlined_call_operand.vmem [shape: f32[6,256], index: 5, kind: output, shape index: {}]
  %s6 = sld [smem:[#allocation0]]
  $region99: #{mypsp_forward.4} parent=0
    _
  %s8 = ssub.s32 1, %s6
  %s9 = scalar_select 0, %s8, %s6
  $region1: #{mypsp_forward.4} parent=0
    #allocation2 [shape = 'u8[65536]{0}', space=vmem, size = 0x10000, scoped, tag = 'input window, operand 2']
    loop: start=0, step=1, limit=4
    $region2: #{mypsp_forward.4} parent=1 // loop_pre_header
      _
    $region3: #{mypsp_forward.4} parent=1 // loop_header
      %s11 = sphi 0, %s15
      %p12 = scmp.ge.s32.totalorder %s11, 4
      %s18 = sphi 0, %s30
      %s19 = sphi 0, %s26
      %s20 = sphi 0, %s18
      %s21 = sphi 0, %s19
      %s22 = sphi 0, %s20
      %s23 = sphi 0, %s21
      %s33 = sphi 0, %s35
      %s36 = sphi 0, %s33
      %s37 = sphi 0, %s36
      %s53 = sphi 0, %s37
      %s61 = sphi 0, %s63
      %s64 = sphi 0, %s61
      %s65 = sphi 0, %s64
      %s81 = sphi 0, %s65
      %s89 = sphi 0, %s91
      %s92 = sphi 0, %s89
      %s93 = sphi 0, %s92
      %s109 = sphi 0, %s93
      %s115 = sphi 0, %s117
      %s118 = sphi 0, %s115
      %s119 = sphi 0, %s118
      %s135 = sphi 0, %s119
      %s141 = sphi 0, %s143
      %s144 = sphi 0, %s141
      %s145 = sphi 0, %s144
      %s161 = sphi 0, %s145
      %s167 = sphi 0, %s169
      %s170 = sphi 0, %s167
      %s171 = sphi 0, %s170
      %s187 = sphi 0, %s171
    $region4: #{mypsp_forward.4} parent=1 // loop_header_branch
      %14 = sbr.rel (%p12) target = $region8
    $region5: #{mypsp_forward.4} parent=1 // loop_body
      %s16 = ssub.s32 %s11, 1
      %s17 = ssub.s32 %s11, 2
      %s24 = sadd.s32 1, %s19
      %p25 = scmp.ge.s32.totalorder %s24, 1
      %s26 = scalar_select %p25, 0, %s24
      %s27 = sadd.s32 1, %s18
      %s28 = scalar_select %p25, %s27, %s18
      %p29 = scmp.ge.s32.totalorder %s28, 2
      %s30 = scalar_select %p29, 0, %s28
      %s31 = ssub.s32 %s19, %s26
      %p32 = scmp.eq.s32.totalorder %s31, 0
      %s34 = sadd.s32 %s33, 1
      %s35 = scalar_select %p32, %s33, %s34
      %p38 = pneg %p32
      %p39 = scmp.eq.s32.totalorder %s11, 1
      %p40 = por %p38, %p39
      %p41 = scmp.ne.s32.totalorder %s33, %s36
      %p42 = scmp.eq.s32.totalorder %s11, 0
      %p43 = por %p41, %p42
      %p44 = scmp.ne.s32.totalorder %s33, %s36
      %p45 = scmp.eq.s32.totalorder %s16, 1
      %p46 = por %p44, %p45
      %p47 = scmp.ne.s32.totalorder %s36, %s37
      %p48 = scmp.eq.s32.totalorder %s16, 0
      %p49 = por %p47, %p48
      %p50 = scmp.ne.s32.totalorder %s36, %s37
      %p51 = scmp.eq.s32.totalorder %s17, 1
      %p52 = por %p50, %p51
      %p54 = scmp.ne.s32.totalorder %s37, %s53
      %p55 = scmp.eq.s32.totalorder %s17, 0
      %p56 = por %p54, %p55
      %s57 = sadd.s32 %s19, 1
      %s58 = sadd.s32 %s26, 1
      %s59 = ssub.s32 %s57, %s58
      %p60 = scmp.eq.s32.totalorder %s59, 0
      %s62 = sadd.s32 %s61, 1
      %s63 = scalar_select %p60, %s61, %s62
      %p66 = pneg %p60
      %p67 = scmp.eq.s32.totalorder %s11, 1
      %p68 = por %p66, %p67
      %p69 = scmp.ne.s32.totalorder %s61, %s64
      %p70 = scmp.eq.s32.totalorder %s11, 0
      %p71 = por %p69, %p70
      %p72 = scmp.ne.s32.totalorder %s61, %s64
      %p73 = scmp.eq.s32.totalorder %s16, 1
      %p74 = por %p72, %p73
      %p75 = scmp.ne.s32.totalorder %s64, %s65
      %p76 = scmp.eq.s32.totalorder %s16, 0
      %p77 = por %p75, %p76
      %p78 = scmp.ne.s32.totalorder %s64, %s65
      %p79 = scmp.eq.s32.totalorder %s17, 1
      %p80 = por %p78, %p79
      %p82 = scmp.ne.s32.totalorder %s65, %s81
      %p83 = scmp.eq.s32.totalorder %s17, 0
      %p84 = por %p82, %p83
      %s85 = ssub.s32 %s19, %s26
      %s86 = ssub.s32 %s18, %s30
      %s87 = sor.u32 %s85, %s86
      %p88 = scmp.eq.s32.totalorder %s87, 0
      %s90 = sadd.s32 %s89, 1
      %s91 = scalar_select %p88, %s89, %s90
      %p94 = pneg %p88
      %p95 = scmp.eq.s32.totalorder %s11, 1
      %p96 = por %p94, %p95
      %p97 = scmp.ne.s32.totalorder %s89, %s92
      %p98 = scmp.eq.s32.totalorder %s11, 0
      %p99 = por %p97, %p98
      %p100 = scmp.ne.s32.totalorder %s89, %s92
      %p101 = scmp.eq.s32.totalorder %s16, 1
      %p102 = por %p100, %p101
      %p103 = scmp.ne.s32.totalorder %s92, %s93
      %p104 = scmp.eq.s32.totalorder %s16, 0
      %p105 = por %p103, %p104
      %p106 = scmp.ne.s32.totalorder %s92, %s93
      %p107 = scmp.eq.s32.totalorder %s17, 1
      %p108 = por %p106, %p107
      %p110 = scmp.ne.s32.totalorder %s93, %s109
      %p111 = scmp.eq.s32.totalorder %s17, 0
      %p112 = por %p110, %p111
      %s113 = ssub.s32 %s18, %s30
      %p114 = scmp.eq.s32.totalorder %s113, 0
      %s116 = sadd.s32 %s115, 1
      %s117 = scalar_select %p114, %s115, %s116
      %p120 = pneg %p114
      %p121 = scmp.eq.s32.totalorder %s11, 1
      %p122 = por %p120, %p121
      %p123 = scmp.ne.s32.totalorder %s115, %s118
      %p124 = scmp.eq.s32.totalorder %s11, 0
      %p125 = por %p123, %p124
      %p126 = scmp.ne.s32.totalorder %s115, %s118
      %p127 = scmp.eq.s32.totalorder %s16, 1
      %p128 = por %p126, %p127
      %p129 = scmp.ne.s32.totalorder %s118, %s119
      %p130 = scmp.eq.s32.totalorder %s16, 0
      %p131 = por %p129, %p130
      %p132 = scmp.ne.s32.totalorder %s118, %s119
      %p133 = scmp.eq.s32.totalorder %s17, 1
      %p134 = por %p132, %p133
      %p136 = scmp.ne.s32.totalorder %s119, %s135
      %p137 = scmp.eq.s32.totalorder %s17, 0
      %p138 = por %p136, %p137
      %s139 = ssub.s32 %s18, %s30
      %p140 = scmp.eq.s32.totalorder %s139, 0
      %s142 = sadd.s32 %s141, 1
      %s143 = scalar_select %p140, %s141, %s142
      %p146 = pneg %p140
      %p147 = scmp.eq.s32.totalorder %s11, 1
      %p148 = por %p146, %p147
      %p149 = scmp.ne.s32.totalorder %s141, %s144
      %p150 = scmp.eq.s32.totalorder %s11, 0
      %p151 = por %p149, %p150
      %p152 = scmp.ne.s32.totalorder %s141, %s144
      %p153 = scmp.eq.s32.totalorder %s16, 1
      %p154 = por %p152, %p153
      %p155 = scmp.ne.s32.totalorder %s144, %s145
      %p156 = scmp.eq.s32.totalorder %s16, 0
      %p157 = por %p155, %p156
      %p158 = scmp.ne.s32.totalorder %s144, %s145
      %p159 = scmp.eq.s32.totalorder %s17, 1
      %p160 = por %p158, %p159
      %p162 = scmp.ne.s32.totalorder %s145, %s161
      %p163 = scmp.eq.s32.totalorder %s17, 0
      %p164 = por %p162, %p163
      %s165 = ssub.s32 %s18, %s30
      %p166 = scmp.eq.s32.totalorder %s165, 0
      %s168 = sadd.s32 %s167, 1
      %s169 = scalar_select %p166, %s167, %s168
      %p172 = pneg %p166
      %p173 = scmp.eq.s32.totalorder %s11, 1
      %p174 = por %p172, %p173
      %p175 = scmp.ne.s32.totalorder %s167, %s170
      %p176 = scmp.eq.s32.totalorder %s11, 0
      %p177 = por %p175, %p176
      %p178 = scmp.ne.s32.totalorder %s167, %s170
      %p179 = scmp.eq.s32.totalorder %s16, 1
      %p180 = por %p178, %p179
      %p181 = scmp.ne.s32.totalorder %s170, %s171
      %p182 = scmp.eq.s32.totalorder %s16, 0
      %p183 = por %p181, %p182
      %p184 = scmp.ne.s32.totalorder %s170, %s171
      %p185 = scmp.eq.s32.totalorder %s17, 1
      %p186 = por %p184, %p185
      %p188 = scmp.ne.s32.totalorder %s171, %s187
      %p189 = scmp.eq.s32.totalorder %s17, 0
      %p190 = por %p188, %p189
      %p191 = scmp.le.s32.totalorder 1, %s11
      %p192 = scmp.lt.s32.totalorder %s11, 3
      %p193 = pnand %p191, %p192
      %p194 = pneg %p193
      // Predicated region
      $region9: #{mypsp_forward.4} parent=5 // pred_check
        _
      $region10: #{mypsp_forward.4} parent=5 // pred_check_branch
        %196 = sbr.rel (%p193) target = $region12
      $region11: #{mypsp_forward.4} parent=5 // pred_region
        %s197 = ssub.s32 %s11, 1
        // Predicated region
        $region13: #{mypsp_forward.4} parent=11 // pred_check
          %p198 = pneg %p49
        $region14: #{mypsp_forward.4} parent=11 // pred_check_branch
          %200 = sbr.rel (%p198) target = $region16
        $region15: #{mypsp_forward.4} parent=11 // pred_region
          %s201 = smul.u32 2, %s21
          %p202 = scmp.lt.s32.totalorder %s201, 3
          %s203 = scalar_select %p202, %s201, 3
          %s204 = smul.addr %s203, 4
          %s205 = scalar_lea.vmem %s0, %s204
          %s206 = smul.u32 2, %s21
        $region16: #{mypsp_forward.4} parent=11 // pred_fallthru
          _
        // Predicated region
        $region17: #{mypsp_forward.4} parent=11 // pred_check
          %p207 = pneg %p77
        $region18: #{mypsp_forward.4} parent=11 // pred_check_branch
          %209 = sbr.rel (%p207) target = $region20
        $region19: #{mypsp_forward.4} parent=11 // pred_region
          %s210 = sadd.s32 %s21, 1
          %s211 = smul.u32 2, %s210
          %p212 = scmp.lt.s32.totalorder %s211, 3
          %s213 = scalar_select %p212, %s211, 3
          %s214 = smul.addr %s213, 4
          %s215 = scalar_lea.vmem %s1, %s214
          %s216 = sadd.s32 %s21, 1
          %s217 = smul.u32 2, %s216
        $region20: #{mypsp_forward.4} parent=11 // pred_fallthru
          _
      $region12: #{mypsp_forward.4} parent=5 // pred_fallthru
        _
      %p218 = scmp.lt.s32.totalorder %s11, 2
      // Predicated region
      $region21: #{mypsp_forward.4} parent=5 // pred_check
        %p219 = pneg %p218
      $region22: #{mypsp_forward.4} parent=5 // pred_check_branch
        %221 = sbr.rel (%p219) target = $region24
      $region23: #{mypsp_forward.4} parent=5 // pred_region
        // Predicated region
        $region25: #{mypsp_forward.4} parent=23 // pred_check
          %p222 = pneg %p99
        $region26: #{mypsp_forward.4} parent=23 // pred_check_branch
          %224 = sbr.rel (%p222) target = $region28
        $region27: #{mypsp_forward.4} parent=23 // pred_region
          %s225 = sand.u32 %s89, 1
          %s226 = sand.u32 %s89, 1
          %s227 = smul.addr %s226, 64
          %s228 = scalar_lea.vmem [#allocation2], %s227
          %s229 = smul.u32 8, %s19
          %s230 = smul.addr %s229, 2
          %s231 = sadd.s32 %s18, %s230
          %s232 = smul.addr %s231, 8
          %s233 = scalar_lea.vmem %s2, %s232
          // Predicated region
          $region29: #{mypsp_forward.4} parent=27 // pred_check
            _
          $region30: #{mypsp_forward.4} parent=27 // pred_check_branch
            %235 = sbr.rel (0) target = $region32
          $region31: #{mypsp_forward.4} parent=27 // pred_region
            // Predicated region
            $region33: #{mypsp_forward.4} parent=31 // pred_check
              _
            $region34: #{mypsp_forward.4} parent=31 // pred_check_branch
              %237 = sbr.rel (0) target = $region36
            $region35: #{mypsp_forward.4} parent=31 // pred_region
              // Predicated region
              $region48: #{mypsp_forward.4} parent=35 // pred_check
                _
              $region49: #{mypsp_forward.4} parent=35 // pred_check_branch
                %266 = sbr.rel (0) target = $region51
              $region50: #{mypsp_forward.4} parent=35 // pred_region
                loop: start=0, step=1, limit=1
                $region52: #{mypsp_forward.4} parent=50 // loop_pre_header
                  _
                $region53: #{mypsp_forward.4} parent=50 // loop_header
                  %s268 = sphi 0, %s272
                  %p269 = scmp.ge.s32.totalorder %s268, 1
                  %s273 = sphi %s233, %s233
                  %s274 = sphi %s228, %s228
                $region54: #{mypsp_forward.4} parent=50 // loop_header_branch
                  %271 = sbr.rel (%p269) target = $region58
                $region55: #{mypsp_forward.4} parent=50 // loop_body
                  %v275 = vld [vmem:[%s273] sm:$0xff]
                  %276 = vst [vmem:[%s274] sm:$0xff] %v275
                  %v277 = vld [vmem:[%s273 + $0x10] sm:$0xff]
                  %278 = vst [vmem:[%s274 + $0x8] sm:$0xff] %v277
                  %v279 = vld [vmem:[%s273 + $0x20] sm:$0xff]
                  %280 = vst [vmem:[%s274 + $0x10] sm:$0xff] %v279
                  %v281 = vld [vmem:[%s273 + $0x30] sm:$0xff]
                  %282 = vst [vmem:[%s274 + $0x18] sm:$0xff] %v281
                  %v283 = vld [vmem:[%s273 + $0x40] sm:$0xff]
                  %284 = vst [vmem:[%s274 + $0x20] sm:$0xff] %v283
                  %v285 = vld [vmem:[%s273 + $0x50] sm:$0xff]
                  %286 = vst [vmem:[%s274 + $0x28] sm:$0xff] %v285
                  %v287 = vld [vmem:[%s273 + $0x60] sm:$0xff]
                  %288 = vst [vmem:[%s274 + $0x30] sm:$0xff] %v287
                  %v289 = vld [vmem:[%s273 + $0x70] sm:$0xff]
                  %290 = vst [vmem:[%s274 + $0x38] sm:$0xff] %v289
                $region56: #{mypsp_forward.4} parent=50 // loop_footer
                  %s272 = sadd.s32 1, %s268
                $region57: #{mypsp_forward.4} parent=50 // loop_footer_branch
                  %267 = sbr.rel target = $region53
                $region58: #{mypsp_forward.4} parent=50 // loop_exit
                  _
              $region51: #{mypsp_forward.4} parent=35 // pred_fallthru
                _
              // Predicated region
              $region59: #{mypsp_forward.4} parent=35 // pred_check
                _
              $region60: #{mypsp_forward.4} parent=35 // pred_check_branch
                %292 = sbr.rel target = $region62
              $region61: #{mypsp_forward.4} parent=35 // pred_region
                _
              $region62: #{mypsp_forward.4} parent=35 // pred_fallthru
                _
            $region36: #{mypsp_forward.4} parent=31 // pred_fallthru
              _
            // Predicated region
            $region37: #{mypsp_forward.4} parent=31 // pred_check
              _
            $region38: #{mypsp_forward.4} parent=31 // pred_check_branch
              %239 = sbr.rel target = $region40
            $region39: #{mypsp_forward.4} parent=31 // pred_region
              loop: start=0, step=1, limit=1
              $region41: #{mypsp_forward.4} parent=39 // loop_pre_header
                _
              $region42: #{mypsp_forward.4} parent=39 // loop_header
                %s242 = sphi 0, %s246
                %p243 = scmp.ge.s32.totalorder %s242, 1
                %s247 = sphi %s233, %s233
                %s248 = sphi %s228, %s228
              $region43: #{mypsp_forward.4} parent=39 // loop_header_branch
                %245 = sbr.rel (%p243) target = $region47
              $region44: #{mypsp_forward.4} parent=39 // loop_body
                %v249 = vld [vmem:[%s247] sm:$0xff]
                %250 = vst [vmem:[%s248] sm:$0xff] %v249
                %v251 = vld [vmem:[%s247 + $0x10] sm:$0xff]
                %252 = vst [vmem:[%s248 + $0x8] sm:$0xff] %v251
                %v253 = vld [vmem:[%s247 + $0x20] sm:$0xff]
                %254 = vst [vmem:[%s248 + $0x10] sm:$0xff] %v253
                %v255 = vld [vmem:[%s247 + $0x30] sm:$0xff]
                %256 = vst [vmem:[%s248 + $0x18] sm:$0xff] %v255
                %v257 = vld [vmem:[%s247 + $0x40] sm:$0xff]
                %258 = vst [vmem:[%s248 + $0x20] sm:$0xff] %v257
                %v259 = vld [vmem:[%s247 + $0x50] sm:$0xff]
                %260 = vst [vmem:[%s248 + $0x28] sm:$0xff] %v259
                %v261 = vld [vmem:[%s247 + $0x60] sm:$0xff]
                %262 = vst [vmem:[%s248 + $0x30] sm:$0xff] %v261
                %v263 = vld [vmem:[%s247 + $0x70] sm:$0xff]
                %264 = vst [vmem:[%s248 + $0x38] sm:$0xff] %v263
              $region45: #{mypsp_forward.4} parent=39 // loop_footer
                %s246 = sadd.s32 1, %s242
              $region46: #{mypsp_forward.4} parent=39 // loop_footer_branch
                %241 = sbr.rel target = $region42
              $region47: #{mypsp_forward.4} parent=39 // loop_exit
                _
            $region40: #{mypsp_forward.4} parent=31 // pred_fallthru
              _
          $region32: #{mypsp_forward.4} parent=27 // pred_fallthru
            _
          %293 = vnop
        $region28: #{mypsp_forward.4} parent=23 // pred_fallthru
          _
        // Predicated region
        $region63: #{mypsp_forward.4} parent=23 // pred_check
          %p294 = pneg %p125
        $region64: #{mypsp_forward.4} parent=23 // pred_check_branch
          %296 = sbr.rel (%p294) target = $region66
        $region65: #{mypsp_forward.4} parent=23 // pred_region
          %p297 = scmp.lt.s32.totalorder %s18, 1
          %s298 = scalar_select %p297, %s18, 1
          %s299 = scalar_lea.vmem %s3, %s298
        $region66: #{mypsp_forward.4} parent=23 // pred_fallthru
          _
        // Predicated region
        $region67: #{mypsp_forward.4} parent=23 // pred_check
          %p300 = pneg %p151
        $region68: #{mypsp_forward.4} parent=23 // pred_check_branch
          %302 = sbr.rel (%p300) target = $region70
        $region69: #{mypsp_forward.4} parent=23 // pred_region
          %p303 = scmp.lt.s32.totalorder %s18, 1
          %s304 = scalar_select %p303, %s18, 1
          %s305 = scalar_lea.vmem %s4, %s304
        $region70: #{mypsp_forward.4} parent=23 // pred_fallthru
          _
      $region24: #{mypsp_forward.4} parent=5 // pred_fallthru
        _
      %p306 = scmp.le.s32.totalorder 1, %s11
      %p307 = scmp.lt.s32.totalorder %s11, 3
      %p308 = pnand %p306, %p307
      %p309 = pneg %p308
      // Predicated region
      $region71: #{mypsp_forward.4} parent=5 // pred_check
        _
      $region72: #{mypsp_forward.4} parent=5 // pred_check_branch
        %311 = sbr.rel (%p308) target = $region74
      $region73: #{mypsp_forward.4} parent=5 // pred_region
        %s312 = ssub.s32 %s11, 1
        %s313 = sand.u32 %s92, 1
        %s314 = sand.u32 %s92, 1
        %s315 = smul.addr %s314, 64
        %s316 = scalar_lea.vmem [#allocation2], %s315
        // Predicated region
        $region75: #{mypsp_forward.4} parent=73 // pred_check
          %p317 = pneg %p105
        $region76: #{mypsp_forward.4} parent=73 // pred_check_branch
          %319 = sbr.rel (%p317) target = $region78
        $region77: #{mypsp_forward.4} parent=73 // pred_region
          _
        $region78: #{mypsp_forward.4} parent=73 // pred_fallthru
          _
        %s320 = smul.u32 2, %s21
        %p321 = scmp.lt.s32.totalorder %s320, 3
        %s322 = scalar_select %p321, %s320, 3
        %s323 = smul.addr %s322, 4
        %s324 = scalar_lea.vmem %s0, %s323
        %p325 = pneg %p49
        %p326 = pneg %p46
        %s327 = sadd.s32 %s21, 1
        %s328 = smul.u32 2, %s327
        %p329 = scmp.lt.s32.totalorder %s328, 3
        %s330 = scalar_select %p329, %s328, 3
        %s331 = smul.addr %s330, 4
        %s332 = scalar_lea.vmem %s1, %s331
        %p333 = pneg %p77
        %p334 = pneg %p74
        %s335 = sand.u32 %s92, 1
        %s336 = sand.u32 %s92, 1
        %s337 = smul.addr %s336, 64
        %s338 = scalar_lea.vmem [#allocation2], %s337
        %p339 = pneg %p105
        %p340 = pneg %p102
        %p341 = scmp.lt.s32.totalorder %s20, 1
        %s342 = scalar_select %p341, %s20, 1
        %s343 = scalar_lea.vmem %s3, %s342
        %p344 = pneg %p131
        %p345 = pneg %p128
        %p346 = scmp.lt.s32.totalorder %s20, 1
        %s347 = scalar_select %p346, %s20, 1
        %s348 = scalar_lea.vmem %s4, %s347
        %p349 = pneg %p157
        %p350 = pneg %p154
        %p351 = pneg %p183
        %p352 = pneg %p180
        %p353 = scmp.lt.s32.totalorder %s20, 1
        %s354 = scalar_select %p353, %s20, 1
        %s355 = smul.addr %s354, 8
        %s356 = scalar_lea.vmem %s5, %s355
        %s357 = smul.u32 2, %s21
        %p358 = scmp.lt.s32.totalorder %s357, 3
        %s359 = scalar_select %p358, %s357, 3
        %s360 = smul.addr %s359, 4
        %s361 = scalar_lea.vmem %s0, %s360
        %s362 = smul.u32 2, %s21
        %s363 = sadd.s32 %s21, 1
        %s364 = smul.u32 2, %s363
        %p365 = scmp.lt.s32.totalorder %s364, 3
        %s366 = scalar_select %p365, %s364, 3
        %s367 = smul.addr %s366, 4
        %s368 = scalar_lea.vmem %s1, %s367
        %s369 = sadd.s32 %s21, 1
        %s370 = smul.u32 2, %s369
        %s371 = smul.u32 8, %s21
        %p372 = scmp.lt.s32.totalorder %s20, 1
        %s373 = scalar_select %p372, %s20, 1
        %s374 = scalar_lea.vmem %s3, %s373
        %p375 = scmp.lt.s32.totalorder %s20, 1
        %s376 = scalar_select %p375, %s20, 1
        %s377 = scalar_lea.vmem %s4, %s376
        %p378 = scmp.lt.s32.totalorder %s20, 1
        %s379 = scalar_select %p378, %s20, 1
        %s380 = smul.addr %s379, 8
        %s381 = scalar_lea.vmem %s5, %s380
        %p383 = scmp.eq.s32.totalorder %s21, 0
        // Predicated region
        $region79: #{mypsp_forward.4} parent=73 // pred_check
          %p384 = pneg %p383
        $region80: #{mypsp_forward.4} parent=73 // pred_check_branch
          %386 = sbr.rel (%p384) target = $region82
        $region81: #{mypsp_forward.4} parent=73 // pred_region
          %387 = vst [vmem:[%s381] sm:$0x3f] 0.0
        $region82: #{mypsp_forward.4} parent=73 // pred_fallthru
          _
        %v388 = vld [vmem:[%s368] sm:$0x77]
        %v389 = vld [vmem:[%s361] sm:$0x77]
        %v390 = vsub.bf16 %v388, %v389
        %v391 = vld [vmem:[%s381] sm:$0x3f]
        %v392 = vld [vmem:[%s316] sm:$0xff]
        %v393 = vld [vmem:[%s316 + $0x8] sm:$0xff]
        %v394 = vld [vmem:[%s316 + $0x10] sm:$0xff]
        %v395 = vld [vmem:[%s316 + $0x18] sm:$0xff]
        %v396 = vld [vmem:[%s316 + $0x20] sm:$0xff]
        %v397 = vld [vmem:[%s316 + $0x28] sm:$0xff]
        %v398 = vld [vmem:[%s316 + $0x30] sm:$0xff]
        %v399 = vld [vmem:[%s316 + $0x38] sm:$0xff]
        %v400 = vunpack.c.l.s8.bf16 %v392
        %v401 = vunpack.c.h.s8.bf16 %v392
        %v402 = vunpack.c.l.s8.bf16 %v393
        %v403 = vunpack.c.h.s8.bf16 %v393
        %v404 = vunpack.c.l.s8.bf16 %v394
        %v405 = vunpack.c.h.s8.bf16 %v394
        %v406 = vunpack.c.l.s8.bf16 %v395
        %v407 = vunpack.c.h.s8.bf16 %v395
        %v408 = vunpack.c.l.s8.bf16 %v396
        %v409 = vunpack.c.h.s8.bf16 %v396
        %v410 = vunpack.c.l.s8.bf16 %v397
        %v411 = vunpack.c.h.s8.bf16 %v397
        %v412 = vunpack.c.l.s8.bf16 %v398
        %v413 = vunpack.c.h.s8.bf16 %v398
        %v414 = vunpack.c.l.s8.bf16 %v399
        %v415 = vunpack.c.h.s8.bf16 %v399
        %v417 = vunpack.c.l.b16 %v390
        %v418 = vunpack.c.h.b16 %v390
        %v419 = vpack.c.b16 %v417, %v417
        %v420 = vpack.c.b16 %v418, %v418
        %423 = vmatprep.subr.bf16.mxu0 0
        %424 = vmatpush1.bf16.msra.mxu0 %v400
        %425 = vmatprep.subr.bf16.mxu0 0
        %426 = vmatpush1.bf16.msra.mxu0 %v401
        %427 = vmatprep.subr.bf16.mxu0 0
        %428 = vmatpush1.bf16.msra.mxu0 %v402
        %429 = vmatprep.subr.bf16.mxu0 0
        %430 = vmatpush1.bf16.msra.mxu0 %v403
        %431 = vmatprep.subr.bf16.mxu0 0
        %432 = vmatpush1.bf16.msra.mxu0 %v404
        %433 = vmatprep.subr.bf16.mxu0 0
        %434 = vmatpush1.bf16.msra.mxu0 %v405
        %435 = vmatprep.subr.bf16.mxu0 0
        %436 = vmatpush1.bf16.msra.mxu0 %v406
        %437 = vmatprep.subr.bf16.mxu0 0
        %438 = vmatpush1.bf16.msra.mxu0 %v407
        %439 = vmatprep.subr.bf16.mxu0 0
        %440 = vmatpush1.bf16.msra.mxu0 %v408
        %441 = vmatprep.subr.bf16.mxu0 0
        %442 = vmatpush1.bf16.msra.mxu0 %v409
        %443 = vmatprep.subr.bf16.mxu0 0
        %444 = vmatpush1.bf16.msra.mxu0 %v410
        %445 = vmatprep.subr.bf16.mxu0 0
        %446 = vmatpush1.bf16.msra.mxu0 %v411
        %447 = vmatprep.subr.bf16.mxu0 0
        %448 = vmatpush1.bf16.msra.mxu0 %v412
        %449 = vmatprep.subr.bf16.mxu0 0
        %450 = vmatpush1.bf16.msra.mxu0 %v413
        %451 = vmatprep.subr.bf16.mxu0 0
        %452 = vmatpush1.bf16.msra.mxu0 %v414
        %453 = vmatprep.subr.bf16.mxu0 0
        %454 = vmatpush1.bf16.msra.mxu0 %v415
        %455 = vmatprep.mubr.bf16.mxu0 %v420
        %456 = vmatmul.mubr.bf16.gmra.mrb[0].mxu0 %v419
        %v457 = vpop.f32.mrb[0].mxu0
        %v458 = vadd.f32 0.0, %v457
        %v459 = vpop.f32.mrb[0].mxu0
        %v460 = vpop.f32.mrb[0].mxu0
        %v461 = vpop.f32.mrb[0].mxu0
        %462 = vdwg.mxu0
        %v463 = vadd.f32 %v391, %v458
        %464 = vst [vmem:[%s381] sm:$0x3f] %v463
        // Predicated region
        $region83: #{mypsp_forward.4} parent=73 // pred_check
          %p465 = pneg %p383
        $region84: #{mypsp_forward.4} parent=73 // pred_check_branch
          %467 = sbr.rel (%p465) target = $region86
        $region85: #{mypsp_forward.4} parent=73 // pred_region
          %v468 = vld [vmem:[%s381] sm:$0x3f]
          %v469 = vld [vmem:[%s374] sm:$0x1]
          %v471 = vlaneseq
          %v472 = vshrl.u32 %v471, 7
          %v473 = vsub.s32 0, %v472
          %v474 = vrot.slane %v469, %v473
          %v476 = vmul.f32 %v468, %v474
          %v477 = vld [vmem:[%s377] sm:$0x1]
          %v479 = vlaneseq
          %v480 = vshrl.u32 %v479, 7
          %v481 = vsub.s32 0, %v480
          %v482 = vrot.slane %v477, %v481
          %v484 = vadd.f32 %v476, %v482
          %v485 = vmax.f32 %v484, 0.0
          %486 = vst [vmem:[%s381] sm:$0x3f] %v485
        $region86: #{mypsp_forward.4} parent=73 // pred_fallthru
          _
        %p487 = scmp.lt.s32.totalorder %s20, 1
        %s488 = scalar_select %p487, %s20, 1
        %s489 = smul.addr %s488, 8
        %s490 = scalar_lea.vmem %s5, %s489
        // Predicated region
        $region87: #{mypsp_forward.4} parent=73 // pred_check
          %p491 = pneg %p180
        $region88: #{mypsp_forward.4} parent=73 // pred_check_branch
          %493 = sbr.rel (%p491) target = $region90
        $region89: #{mypsp_forward.4} parent=73 // pred_region
          _
        $region90: #{mypsp_forward.4} parent=73 // pred_fallthru
          _
      $region74: #{mypsp_forward.4} parent=5 // pred_fallthru
        _
      %p494 = scmp.le.s32.totalorder 2, %s11
      // Predicated region
      $region91: #{mypsp_forward.4} parent=5 // pred_check
        %p495 = pneg %p494
      $region92: #{mypsp_forward.4} parent=5 // pred_check_branch
        %497 = sbr.rel (%p495) target = $region94
      $region93: #{mypsp_forward.4} parent=5 // pred_region
        %s498 = ssub.s32 %s11, 2
        // Predicated region
        $region95: #{mypsp_forward.4} parent=93 // pred_check
          %p499 = pneg %p186
        $region96: #{mypsp_forward.4} parent=93 // pred_check_branch
          %501 = sbr.rel (%p499) target = $region98
        $region97: #{mypsp_forward.4} parent=93 // pred_region
          %p502 = scmp.lt.s32.totalorder %s22, 1
          %s503 = scalar_select %p502, %s22, 1
          %s504 = smul.addr %s503, 8
          %s505 = scalar_lea.vmem %s5, %s504
        $region98: #{mypsp_forward.4} parent=93 // pred_fallthru
          _
      $region94: #{mypsp_forward.4} parent=5 // pred_fallthru
        _
    $region6: #{mypsp_forward.4} parent=1 // loop_footer
      %s15 = sadd.s32 1, %s11
    $region7: #{mypsp_forward.4} parent=1 // loop_footer_branch
      %10 = sbr.rel target = $region3
    $region8: #{mypsp_forward.4} parent=1 // loop_exit
      _

// kernel: mypsp_forward.3
$region0: #{mypsp_forward.3}
  #allocation0 [shape = 'u32[]', space=smem, size = 0x4, offset = 0x4, fixed_abs, tag = 'smem constant byte address 0x4 - core index']
  #allocation1 [shape = 'u32[144,128]{1,0:T(1,128)}', space=vmem, size = 0x12000, scoped, tag = 'internal scratch']
  %s0 = inlined_call_operand.vmem [shape: bf16[2,256], index: 0, kind: input, shape index: {}]
  %s1 = inlined_call_operand.vmem [shape: s8[256,256], index: 1, kind: input, shape index: {}]
  %s2 = inlined_call_operand.vmem [shape: f32[1,256], index: 2, kind: input, shape index: {}]
  %s3 = inlined_call_operand.vmem [shape: f32[1,256], index: 3, kind: input, shape index: {}]
  %s4 = inlined_call_operand.vmem [shape: f32[2,256], index: 4, kind: output, shape index: {}]
  %s5 = sld [smem:[#allocation0]]
  $region95: #{mypsp_forward.3} parent=0
    _
  %s7 = ssub.s32 1, %s5
  %s8 = scalar_select 0, %s7, %s5
  $region1: #{mypsp_forward.3} parent=0
    #allocation2 [shape = 'u8[65536]{0}', space=vmem, size = 0x10000, scoped, tag = 'input window, operand 1']
    loop: start=0, step=1, limit=4
    $region2: #{mypsp_forward.3} parent=1 // loop_pre_header
      _
    $region3: #{mypsp_forward.3} parent=1 // loop_header
      %s10 = sphi 0, %s14
      %p11 = scmp.ge.s32.totalorder %s10, 4
      %s17 = sphi 0, %s29
      %s18 = sphi 0, %s25
      %s19 = sphi 0, %s17
      %s20 = sphi 0, %s18
      %s21 = sphi 0, %s19
      %s22 = sphi 0, %s20
      %s32 = sphi 0, %s34
      %s35 = sphi 0, %s32
      %s36 = sphi 0, %s35
      %s52 = sphi 0, %s36
      %s60 = sphi 0, %s62
      %s63 = sphi 0, %s60
      %s64 = sphi 0, %s63
      %s80 = sphi 0, %s64
      %s86 = sphi 0, %s88
      %s89 = sphi 0, %s86
      %s90 = sphi 0, %s89
      %s106 = sphi 0, %s90
      %s112 = sphi 0, %s114
      %s115 = sphi 0, %s112
      %s116 = sphi 0, %s115
      %s132 = sphi 0, %s116
      %s138 = sphi 0, %s140
      %s141 = sphi 0, %s138
      %s142 = sphi 0, %s141
      %s158 = sphi 0, %s142
    $region4: #{mypsp_forward.3} parent=1 // loop_header_branch
      %13 = sbr.rel (%p11) target = $region8
    $region5: #{mypsp_forward.3} parent=1 // loop_body
      %s15 = ssub.s32 %s10, 1
      %s16 = ssub.s32 %s10, 2
      %s23 = sadd.s32 1, %s18
      %p24 = scmp.ge.s32.totalorder %s23, 1
      %s25 = scalar_select %p24, 0, %s23
      %s26 = sadd.s32 1, %s17
      %s27 = scalar_select %p24, %s26, %s17
      %p28 = scmp.ge.s32.totalorder %s27, 2
      %s29 = scalar_select %p28, 0, %s27
      %s30 = ssub.s32 %s18, %s25
      %p31 = scmp.eq.s32.totalorder %s30, 0
      %s33 = sadd.s32 %s32, 1
      %s34 = scalar_select %p31, %s32, %s33
      %p37 = pneg %p31
      %p38 = scmp.eq.s32.totalorder %s10, 1
      %p39 = por %p37, %p38
      %p40 = scmp.ne.s32.totalorder %s32, %s35
      %p41 = scmp.eq.s32.totalorder %s10, 0
      %p42 = por %p40, %p41
      %p43 = scmp.ne.s32.totalorder %s32, %s35
      %p44 = scmp.eq.s32.totalorder %s15, 1
      %p45 = por %p43, %p44
      %p46 = scmp.ne.s32.totalorder %s35, %s36
      %p47 = scmp.eq.s32.totalorder %s15, 0
      %p48 = por %p46, %p47
      %p49 = scmp.ne.s32.totalorder %s35, %s36
      %p50 = scmp.eq.s32.totalorder %s16, 1
      %p51 = por %p49, %p50
      %p53 = scmp.ne.s32.totalorder %s36, %s52
      %p54 = scmp.eq.s32.totalorder %s16, 0
      %p55 = por %p53, %p54
      %s56 = ssub.s32 %s18, %s25
      %s57 = ssub.s32 %s17, %s29
      %s58 = sor.u32 %s56, %s57
      %p59 = scmp.eq.s32.totalorder %s58, 0
      %s61 = sadd.s32 %s60, 1
      %s62 = scalar_select %p59, %s60, %s61
      %p65 = pneg %p59
      %p66 = scmp.eq.s32.totalorder %s10, 1
      %p67 = por %p65, %p66
      %p68 = scmp.ne.s32.totalorder %s60, %s63
      %p69 = scmp.eq.s32.totalorder %s10, 0
      %p70 = por %p68, %p69
      %p71 = scmp.ne.s32.totalorder %s60, %s63
      %p72 = scmp.eq.s32.totalorder %s15, 1
      %p73 = por %p71, %p72
      %p74 = scmp.ne.s32.totalorder %s63, %s64
      %p75 = scmp.eq.s32.totalorder %s15, 0
      %p76 = por %p74, %p75
      %p77 = scmp.ne.s32.totalorder %s63, %s64
      %p78 = scmp.eq.s32.totalorder %s16, 1
      %p79 = por %p77, %p78
      %p81 = scmp.ne.s32.totalorder %s64, %s80
      %p82 = scmp.eq.s32.totalorder %s16, 0
      %p83 = por %p81, %p82
      %s84 = ssub.s32 %s17, %s29
      %p85 = scmp.eq.s32.totalorder %s84, 0
      %s87 = sadd.s32 %s86, 1
      %s88 = scalar_select %p85, %s86, %s87
      %p91 = pneg %p85
      %p92 = scmp.eq.s32.totalorder %s10, 1
      %p93 = por %p91, %p92
      %p94 = scmp.ne.s32.totalorder %s86, %s89
      %p95 = scmp.eq.s32.totalorder %s10, 0
      %p96 = por %p94, %p95
      %p97 = scmp.ne.s32.totalorder %s86, %s89
      %p98 = scmp.eq.s32.totalorder %s15, 1
      %p99 = por %p97, %p98
      %p100 = scmp.ne.s32.totalorder %s89, %s90
      %p101 = scmp.eq.s32.totalorder %s15, 0
      %p102 = por %p100, %p101
      %p103 = scmp.ne.s32.totalorder %s89, %s90
      %p104 = scmp.eq.s32.totalorder %s16, 1
      %p105 = por %p103, %p104
      %p107 = scmp.ne.s32.totalorder %s90, %s106
      %p108 = scmp.eq.s32.totalorder %s16, 0
      %p109 = por %p107, %p108
      %s110 = ssub.s32 %s17, %s29
      %p111 = scmp.eq.s32.totalorder %s110, 0
      %s113 = sadd.s32 %s112, 1
      %s114 = scalar_select %p111, %s112, %s113
      %p117 = pneg %p111
      %p118 = scmp.eq.s32.totalorder %s10, 1
      %p119 = por %p117, %p118
      %p120 = scmp.ne.s32.totalorder %s112, %s115
      %p121 = scmp.eq.s32.totalorder %s10, 0
      %p122 = por %p120, %p121
      %p123 = scmp.ne.s32.totalorder %s112, %s115
      %p124 = scmp.eq.s32.totalorder %s15, 1
      %p125 = por %p123, %p124
      %p126 = scmp.ne.s32.totalorder %s115, %s116
      %p127 = scmp.eq.s32.totalorder %s15, 0
      %p128 = por %p126, %p127
      %p129 = scmp.ne.s32.totalorder %s115, %s116
      %p130 = scmp.eq.s32.totalorder %s16, 1
      %p131 = por %p129, %p130
      %p133 = scmp.ne.s32.totalorder %s116, %s132
      %p134 = scmp.eq.s32.totalorder %s16, 0
      %p135 = por %p133, %p134
      %s136 = ssub.s32 %s17, %s29
      %p137 = scmp.eq.s32.totalorder %s136, 0
      %s139 = sadd.s32 %s138, 1
      %s140 = scalar_select %p137, %s138, %s139
      %p143 = pneg %p137
      %p144 = scmp.eq.s32.totalorder %s10, 1
      %p145 = por %p143, %p144
      %p146 = scmp.ne.s32.totalorder %s138, %s141
      %p147 = scmp.eq.s32.totalorder %s10, 0
      %p148 = por %p146, %p147
      %p149 = scmp.ne.s32.totalorder %s138, %s141
      %p150 = scmp.eq.s32.totalorder %s15, 1
      %p151 = por %p149, %p150
      %p152 = scmp.ne.s32.totalorder %s141, %s142
      %p153 = scmp.eq.s32.totalorder %s15, 0
      %p154 = por %p152, %p153
      %p155 = scmp.ne.s32.totalorder %s141, %s142
      %p156 = scmp.eq.s32.totalorder %s16, 1
      %p157 = por %p155, %p156
      %p159 = scmp.ne.s32.totalorder %s142, %s158
      %p160 = scmp.eq.s32.totalorder %s16, 0
      %p161 = por %p159, %p160
      %p162 = scmp.le.s32.totalorder 1, %s10
      %p163 = scmp.lt.s32.totalorder %s10, 3
      %p164 = pnand %p162, %p163
      %p165 = pneg %p164
      // Predicated region
      $region9: #{mypsp_forward.3} parent=5 // pred_check
        _
      $region10: #{mypsp_forward.3} parent=5 // pred_check_branch
        %167 = sbr.rel (%p164) target = $region12
      $region11: #{mypsp_forward.3} parent=5 // pred_region
        %s168 = ssub.s32 %s10, 1
        // Predicated region
        $region13: #{mypsp_forward.3} parent=11 // pred_check
          %p169 = pneg %p48
        $region14: #{mypsp_forward.3} parent=11 // pred_check_branch
          %171 = sbr.rel (%p169) target = $region16
        $region15: #{mypsp_forward.3} parent=11 // pred_region
          %s172 = smul.u32 2, %s20
          %p173 = scmp.lt.s32.totalorder %s172, 1
          %s174 = scalar_select %p173, %s172, 1
          %s175 = scalar_lea.vmem %s0, %s174
          %s176 = smul.u32 2, %s20
        $region16: #{mypsp_forward.3} parent=11 // pred_fallthru
          _
      $region12: #{mypsp_forward.3} parent=5 // pred_fallthru
        _
      %p177 = scmp.lt.s32.totalorder %s10, 2
      // Predicated region
      $region17: #{mypsp_forward.3} parent=5 // pred_check
        %p178 = pneg %p177
      $region18: #{mypsp_forward.3} parent=5 // pred_check_branch
        %180 = sbr.rel (%p178) target = $region20
      $region19: #{mypsp_forward.3} parent=5 // pred_region
        // Predicated region
        $region21: #{mypsp_forward.3} parent=19 // pred_check
          %p181 = pneg %p70
        $region22: #{mypsp_forward.3} parent=19 // pred_check_branch
          %183 = sbr.rel (%p181) target = $region24
        $region23: #{mypsp_forward.3} parent=19 // pred_region
          %s184 = sand.u32 %s60, 1
          %s185 = sand.u32 %s60, 1
          %s186 = smul.addr %s185, 64
          %s187 = scalar_lea.vmem [#allocation2], %s186
          %s188 = smul.u32 8, %s18
          %s189 = smul.addr %s188, 2
          %s190 = sadd.s32 %s17, %s189
          %s191 = smul.addr %s190, 8
          %s192 = scalar_lea.vmem %s1, %s191
          // Predicated region
          $region25: #{mypsp_forward.3} parent=23 // pred_check
            _
          $region26: #{mypsp_forward.3} parent=23 // pred_check_branch
            %194 = sbr.rel (0) target = $region28
          $region27: #{mypsp_forward.3} parent=23 // pred_region
            // Predicated region
            $region29: #{mypsp_forward.3} parent=27 // pred_check
              _
            $region30: #{mypsp_forward.3} parent=27 // pred_check_branch
              %196 = sbr.rel (0) target = $region32
            $region31: #{mypsp_forward.3} parent=27 // pred_region
              // Predicated region
              $region44: #{mypsp_forward.3} parent=31 // pred_check
                _
              $region45: #{mypsp_forward.3} parent=31 // pred_check_branch
                %225 = sbr.rel (0) target = $region47
              $region46: #{mypsp_forward.3} parent=31 // pred_region
                loop: start=0, step=1, limit=1
                $region48: #{mypsp_forward.3} parent=46 // loop_pre_header
                  _
                $region49: #{mypsp_forward.3} parent=46 // loop_header
                  %s227 = sphi 0, %s231
                  %p228 = scmp.ge.s32.totalorder %s227, 1
                  %s232 = sphi %s192, %s192
                  %s233 = sphi %s187, %s187
                $region50: #{mypsp_forward.3} parent=46 // loop_header_branch
                  %230 = sbr.rel (%p228) target = $region54
                $region51: #{mypsp_forward.3} parent=46 // loop_body
                  %v234 = vld [vmem:[%s232] sm:$0xff]
                  %235 = vst [vmem:[%s233] sm:$0xff] %v234
                  %v236 = vld [vmem:[%s232 + $0x10] sm:$0xff]
                  %237 = vst [vmem:[%s233 + $0x8] sm:$0xff] %v236
                  %v238 = vld [vmem:[%s232 + $0x20] sm:$0xff]
                  %239 = vst [vmem:[%s233 + $0x10] sm:$0xff] %v238
                  %v240 = vld [vmem:[%s232 + $0x30] sm:$0xff]
                  %241 = vst [vmem:[%s233 + $0x18] sm:$0xff] %v240
                  %v242 = vld [vmem:[%s232 + $0x40] sm:$0xff]
                  %243 = vst [vmem:[%s233 + $0x20] sm:$0xff] %v242
                  %v244 = vld [vmem:[%s232 + $0x50] sm:$0xff]
                  %245 = vst [vmem:[%s233 + $0x28] sm:$0xff] %v244
                  %v246 = vld [vmem:[%s232 + $0x60] sm:$0xff]
                  %247 = vst [vmem:[%s233 + $0x30] sm:$0xff] %v246
                  %v248 = vld [vmem:[%s232 + $0x70] sm:$0xff]
                  %249 = vst [vmem:[%s233 + $0x38] sm:$0xff] %v248
                $region52: #{mypsp_forward.3} parent=46 // loop_footer
                  %s231 = sadd.s32 1, %s227
                $region53: #{mypsp_forward.3} parent=46 // loop_footer_branch
                  %226 = sbr.rel target = $region49
                $region54: #{mypsp_forward.3} parent=46 // loop_exit
                  _
              $region47: #{mypsp_forward.3} parent=31 // pred_fallthru
                _
              // Predicated region
              $region55: #{mypsp_forward.3} parent=31 // pred_check
                _
              $region56: #{mypsp_forward.3} parent=31 // pred_check_branch
                %251 = sbr.rel target = $region58
              $region57: #{mypsp_forward.3} parent=31 // pred_region
                _
              $region58: #{mypsp_forward.3} parent=31 // pred_fallthru
                _
            $region32: #{mypsp_forward.3} parent=27 // pred_fallthru
              _
            // Predicated region
            $region33: #{mypsp_forward.3} parent=27 // pred_check
              _
            $region34: #{mypsp_forward.3} parent=27 // pred_check_branch
              %198 = sbr.rel target = $region36
            $region35: #{mypsp_forward.3} parent=27 // pred_region
              loop: start=0, step=1, limit=1
              $region37: #{mypsp_forward.3} parent=35 // loop_pre_header
                _
              $region38: #{mypsp_forward.3} parent=35 // loop_header
                %s201 = sphi 0, %s205
                %p202 = scmp.ge.s32.totalorder %s201, 1
                %s206 = sphi %s192, %s192
                %s207 = sphi %s187, %s187
              $region39: #{mypsp_forward.3} parent=35 // loop_header_branch
                %204 = sbr.rel (%p202) target = $region43
              $region40: #{mypsp_forward.3} parent=35 // loop_body
                %v208 = vld [vmem:[%s206] sm:$0xff]
                %209 = vst [vmem:[%s207] sm:$0xff] %v208
                %v210 = vld [vmem:[%s206 + $0x10] sm:$0xff]
                %211 = vst [vmem:[%s207 + $0x8] sm:$0xff] %v210
                %v212 = vld [vmem:[%s206 + $0x20] sm:$0xff]
                %213 = vst [vmem:[%s207 + $0x10] sm:$0xff] %v212
                %v214 = vld [vmem:[%s206 + $0x30] sm:$0xff]
                %215 = vst [vmem:[%s207 + $0x18] sm:$0xff] %v214
                %v216 = vld [vmem:[%s206 + $0x40] sm:$0xff]
                %217 = vst [vmem:[%s207 + $0x20] sm:$0xff] %v216
                %v218 = vld [vmem:[%s206 + $0x50] sm:$0xff]
                %219 = vst [vmem:[%s207 + $0x28] sm:$0xff] %v218
                %v220 = vld [vmem:[%s206 + $0x60] sm:$0xff]
                %221 = vst [vmem:[%s207 + $0x30] sm:$0xff] %v220
                %v222 = vld [vmem:[%s206 + $0x70] sm:$0xff]
                %223 = vst [vmem:[%s207 + $0x38] sm:$0xff] %v222
              $region41: #{mypsp_forward.3} parent=35 // loop_footer
                %s205 = sadd.s32 1, %s201
              $region42: #{mypsp_forward.3} parent=35 // loop_footer_branch
                %200 = sbr.rel target = $region38
              $region43: #{mypsp_forward.3} parent=35 // loop_exit
                _
            $region36: #{mypsp_forward.3} parent=27 // pred_fallthru
              _
          $region28: #{mypsp_forward.3} parent=23 // pred_fallthru
            _
          %252 = vnop
        $region24: #{mypsp_forward.3} parent=19 // pred_fallthru
          _
        // Predicated region
        $region59: #{mypsp_forward.3} parent=19 // pred_check
          %p253 = pneg %p96
        $region60: #{mypsp_forward.3} parent=19 // pred_check_branch
          %255 = sbr.rel (%p253) target = $region62
        $region61: #{mypsp_forward.3} parent=19 // pred_region
          %p256 = scmp.lt.s32.totalorder %s17, 1
          %s257 = scalar_select %p256, %s17, 1
          %s258 = scalar_lea.vmem %s2, %s257
        $region62: #{mypsp_forward.3} parent=19 // pred_fallthru
          _
        // Predicated region
        $region63: #{mypsp_forward.3} parent=19 // pred_check
          %p259 = pneg %p122
        $region64: #{mypsp_forward.3} parent=19 // pred_check_branch
          %261 = sbr.rel (%p259) target = $region66
        $region65: #{mypsp_forward.3} parent=19 // pred_region
          %p262 = scmp.lt.s32.totalorder %s17, 1
          %s263 = scalar_select %p262, %s17, 1
          %s264 = scalar_lea.vmem %s3, %s263
        $region66: #{mypsp_forward.3} parent=19 // pred_fallthru
          _
      $region20: #{mypsp_forward.3} parent=5 // pred_fallthru
        _
      %p265 = scmp.le.s32.totalorder 1, %s10
      %p266 = scmp.lt.s32.totalorder %s10, 3
      %p267 = pnand %p265, %p266
      %p268 = pneg %p267
      // Predicated region
      $region67: #{mypsp_forward.3} parent=5 // pred_check
        _
      $region68: #{mypsp_forward.3} parent=5 // pred_check_branch
        %270 = sbr.rel (%p267) target = $region70
      $region69: #{mypsp_forward.3} parent=5 // pred_region
        %s271 = ssub.s32 %s10, 1
        %s272 = sand.u32 %s63, 1
        %s273 = sand.u32 %s63, 1
        %s274 = smul.addr %s273, 64
        %s275 = scalar_lea.vmem [#allocation2], %s274
        // Predicated region
        $region71: #{mypsp_forward.3} parent=69 // pred_check
          %p276 = pneg %p76
        $region72: #{mypsp_forward.3} parent=69 // pred_check_branch
          %278 = sbr.rel (%p276) target = $region74
        $region73: #{mypsp_forward.3} parent=69 // pred_region
          _
        $region74: #{mypsp_forward.3} parent=69 // pred_fallthru
          _
        %s279 = smul.u32 2, %s20
        %p280 = scmp.lt.s32.totalorder %s279, 1
        %s281 = scalar_select %p280, %s279, 1
        %s282 = scalar_lea.vmem %s0, %s281
        %p283 = pneg %p48
        %p284 = pneg %p45
        %s285 = sand.u32 %s63, 1
        %s286 = sand.u32 %s63, 1
        %s287 = smul.addr %s286, 64
        %s288 = scalar_lea.vmem [#allocation2], %s287
        %p289 = pneg %p76
        %p290 = pneg %p73
        %p291 = scmp.lt.s32.totalorder %s19, 1
        %s292 = scalar_select %p291, %s19, 1
        %s293 = scalar_lea.vmem %s2, %s292
        %p294 = pneg %p102
        %p295 = pneg %p99
        %p296 = scmp.lt.s32.totalorder %s19, 1
        %s297 = scalar_select %p296, %s19, 1
        %s298 = scalar_lea.vmem %s3, %s297
        %p299 = pneg %p128
        %p300 = pneg %p125
        %p301 = pneg %p154
        %p302 = pneg %p151
        %p303 = scmp.lt.s32.totalorder %s19, 1
        %s304 = scalar_select %p303, %s19, 1
        %s305 = smul.addr %s304, 2
        %s306 = scalar_lea.vmem %s4, %s305
        %s307 = smul.u32 2, %s20
        %p308 = scmp.lt.s32.totalorder %s307, 1
        %s309 = scalar_select %p308, %s307, 1
        %s310 = scalar_lea.vmem %s0, %s309
        %s311 = smul.u32 2, %s20
        %s312 = smul.u32 8, %s20
        %p313 = scmp.lt.s32.totalorder %s19, 1
        %s314 = scalar_select %p313, %s19, 1
        %s315 = scalar_lea.vmem %s2, %s314
        %p316 = scmp.lt.s32.totalorder %s19, 1
        %s317 = scalar_select %p316, %s19, 1
        %s318 = scalar_lea.vmem %s3, %s317
        %p319 = scmp.lt.s32.totalorder %s19, 1
        %s320 = scalar_select %p319, %s19, 1
        %s321 = smul.addr %s320, 2
        %s322 = scalar_lea.vmem %s4, %s321
        %p324 = scmp.eq.s32.totalorder %s20, 0
        // Predicated region
        $region75: #{mypsp_forward.3} parent=69 // pred_check
          %p325 = pneg %p324
        $region76: #{mypsp_forward.3} parent=69 // pred_check_branch
          %327 = sbr.rel (%p325) target = $region78
        $region77: #{mypsp_forward.3} parent=69 // pred_region
          %328 = vst [vmem:[%s322] sm:$0x3] 0.0
        $region78: #{mypsp_forward.3} parent=69 // pred_fallthru
          _
        %v329 = vld [vmem:[%s322] sm:$0x3]
        %v330 = vld [vmem:[%s310] sm:$0x3]
        %v331 = vld [vmem:[%s275] sm:$0xff]
        %v332 = vld [vmem:[%s275 + $0x8] sm:$0xff]
        %v333 = vld [vmem:[%s275 + $0x10] sm:$0xff]
        %v334 = vld [vmem:[%s275 + $0x18] sm:$0xff]
        %v335 = vld [vmem:[%s275 + $0x20] sm:$0xff]
        %v336 = vld [vmem:[%s275 + $0x28] sm:$0xff]
        %v337 = vld [vmem:[%s275 + $0x30] sm:$0xff]
        %v338 = vld [vmem:[%s275 + $0x38] sm:$0xff]
        %v339 = vunpack.c.l.s8.bf16 %v331
        %v340 = vunpack.c.h.s8.bf16 %v331
        %v341 = vunpack.c.l.s8.bf16 %v332
        %v342 = vunpack.c.h.s8.bf16 %v332
        %v343 = vunpack.c.l.s8.bf16 %v333
        %v344 = vunpack.c.h.s8.bf16 %v333
        %v345 = vunpack.c.l.s8.bf16 %v334
        %v346 = vunpack.c.h.s8.bf16 %v334
        %v347 = vunpack.c.l.s8.bf16 %v335
        %v348 = vunpack.c.h.s8.bf16 %v335
        %v349 = vunpack.c.l.s8.bf16 %v336
        %v350 = vunpack.c.h.s8.bf16 %v336
        %v351 = vunpack.c.l.s8.bf16 %v337
        %v352 = vunpack.c.h.s8.bf16 %v337
        %v353 = vunpack.c.l.s8.bf16 %v338
        %v354 = vunpack.c.h.s8.bf16 %v338
        %v357 = vunpack.c.l.s4 1966171168
        %v358 = vunpack.c.0.s8 %v357
        %v359 = vlaneseq
        %v360 = vshrl.u32 %v359, 7
        %v361 = vsub.s32 %v358, %v360
        %v362 = vrot.slane %v330, %v361
        %v363 = vcombine.high %v362, %v362
        %v365 = vunpack.c.l.s4 1966171168
        %v366 = vunpack.c.0.s8 %v365
        %v367 = vlaneseq
        %v368 = vshrl.u32 %v367, 7
        %v369 = vsub.s32 %v366, %v368
        %v370 = vrot.slane %v362, %v369
        %v372 = vunpack.c.l.s4 1966171168
        %v373 = vunpack.c.0.s8 %v372
        %v374 = vlaneseq
        %v375 = vshrl.u32 %v374, 7
        %v376 = vsub.s32 %v373, %v375
        %v377 = vrot.slane %v363, %v376
        %380 = vmatprep.subr.bf16.mxu0 0
        %381 = vmatpush1.bf16.msra.mxu0 %v339
        %382 = vmatprep.subr.bf16.mxu0 0
        %383 = vmatpush1.bf16.msra.mxu0 %v340
        %384 = vmatprep.subr.bf16.mxu0 0
        %385 = vmatpush1.bf16.msra.mxu0 %v341
        %386 = vmatprep.subr.bf16.mxu0 0
        %387 = vmatpush1.bf16.msra.mxu0 %v342
        %388 = vmatprep.subr.bf16.mxu0 0
        %389 = vmatpush1.bf16.msra.mxu0 %v343
        %390 = vmatprep.subr.bf16.mxu0 0
        %391 = vmatpush1.bf16.msra.mxu0 %v344
        %392 = vmatprep.subr.bf16.mxu0 0
        %393 = vmatpush1.bf16.msra.mxu0 %v345
        %394 = vmatprep.subr.bf16.mxu0 0
        %395 = vmatpush1.bf16.msra.mxu0 %v346
        %396 = vmatprep.subr.bf16.mxu0 0
        %397 = vmatpush1.bf16.msra.mxu0 %v347
        %398 = vmatprep.subr.bf16.mxu0 0
        %399 = vmatpush1.bf16.msra.mxu0 %v348
        %400 = vmatprep.subr.bf16.mxu0 0
        %401 = vmatpush1.bf16.msra.mxu0 %v349
        %402 = vmatprep.subr.bf16.mxu0 0
        %403 = vmatpush1.bf16.msra.mxu0 %v350
        %404 = vmatprep.subr.bf16.mxu0 0
        %405 = vmatpush1.bf16.msra.mxu0 %v351
        %406 = vmatprep.subr.bf16.mxu0 0
        %407 = vmatpush1.bf16.msra.mxu0 %v352
        %408 = vmatprep.subr.bf16.mxu0 0
        %409 = vmatpush1.bf16.msra.mxu0 %v353
        %410 = vmatprep.subr.bf16.mxu0 0
        %411 = vmatpush1.bf16.msra.mxu0 %v354
        %412 = vmatprep.mubr.bf16.mxu0 %v377
        %413 = vmatmul.mubr.bf16.gmra.mrb[0].mxu0 %v370
        %v414 = vpop.f32.mrb[0].mxu0
        %v415 = vadd.f32 0.0, %v414
        %v416 = vpop.f32.mrb[0].mxu0
        %v417 = vpop.f32.mrb[0].mxu0
        %v418 = vpop.f32.mrb[0].mxu0
        %419 = vdwg.mxu0
        %v420 = vadd.f32 %v329, %v415
        %421 = vst [vmem:[%s322] sm:$0x3] %v420
        // Predicated region
        $region79: #{mypsp_forward.3} parent=69 // pred_check
          %p422 = pneg %p324
        $region80: #{mypsp_forward.3} parent=69 // pred_check_branch
          %424 = sbr.rel (%p422) target = $region82
        $region81: #{mypsp_forward.3} parent=69 // pred_region
          %v425 = vld [vmem:[%s322] sm:$0x3]
          %v426 = vld [vmem:[%s315] sm:$0x1]
          %v428 = vlaneseq
          %v429 = vshrl.u32 %v428, 7
          %v430 = vsub.s32 0, %v429
          %v431 = vrot.slane %v426, %v430
          %v433 = vmul.f32 %v425, %v431
          %v434 = vld [vmem:[%s318] sm:$0x1]
          %v436 = vlaneseq
          %v437 = vshrl.u32 %v436, 7
          %v438 = vsub.s32 0, %v437
          %v439 = vrot.slane %v434, %v438
          %v441 = vadd.f32 %v433, %v439
          %v442 = vmax.f32 %v441, 0.0
          %443 = vst [vmem:[%s322] sm:$0x3] %v442
        $region82: #{mypsp_forward.3} parent=69 // pred_fallthru
          _
        %p444 = scmp.lt.s32.totalorder %s19, 1
        %s445 = scalar_select %p444, %s19, 1
        %s446 = smul.addr %s445, 2
        %s447 = scalar_lea.vmem %s4, %s446
        // Predicated region
        $region83: #{mypsp_forward.3} parent=69 // pred_check
          %p448 = pneg %p151
        $region84: #{mypsp_forward.3} parent=69 // pred_check_branch
          %450 = sbr.rel (%p448) target = $region86
        $region85: #{mypsp_forward.3} parent=69 // pred_region
          _
        $region86: #{mypsp_forward.3} parent=69 // pred_fallthru
          _
      $region70: #{mypsp_forward.3} parent=5 // pred_fallthru
        _
      %p451 = scmp.le.s32.totalorder 2, %s10
      // Predicated region
      $region87: #{mypsp_forward.3} parent=5 // pred_check
        %p452 = pneg %p451
      $region88: #{mypsp_forward.3} parent=5 // pred_check_branch
        %454 = sbr.rel (%p452) target = $region90
      $region89: #{mypsp_forward.3} parent=5 // pred_region
        %s455 = ssub.s32 %s10, 2
        // Predicated region
        $region91: #{mypsp_forward.3} parent=89 // pred_check
          %p456 = pneg %p157
        $region92: #{mypsp_forward.3} parent=89 // pred_check_branch
          %458 = sbr.rel (%p456) target = $region94
        $region93: #{mypsp_forward.3} parent=89 // pred_region
          %p459 = scmp.lt.s32.totalorder %s21, 1
          %s460 = scalar_select %p459, %s21, 1
          %s461 = smul.addr %s460, 2
          %s462 = scalar_lea.vmem %s4, %s461
        $region94: #{mypsp_forward.3} parent=89 // pred_fallthru
          _
      $region90: #{mypsp_forward.3} parent=5 // pred_fallthru
        _
    $region6: #{mypsp_forward.3} parent=1 // loop_footer
      %s14 = sadd.s32 1, %s10
    $region7: #{mypsp_forward.3} parent=1 // loop_footer_branch
      %9 = sbr.rel target = $region3
    $region8: #{mypsp_forward.3} parent=1 // loop_exit
      _

// kernel: mypsp_forward.5
$region0: #{mypsp_forward.5}
  #allocation0 [shape = 'u32[]', space=smem, size = 0x4, offset = 0x4, fixed_abs, tag = 'smem constant byte address 0x4 - core index']
  #allocation1 [shape = 'u32[144,128]{1,0:T(1,128)}', space=vmem, size = 0x12000, scoped, tag = 'internal scratch']
  %s0 = inlined_call_operand.vmem [shape: bf16[2,512], index: 0, kind: input, shape index: {}]
  %s1 = inlined_call_operand.vmem [shape: s8[512,256], index: 1, kind: input, shape index: {}]
  %s2 = inlined_call_operand.vmem [shape: f32[1,256], index: 2, kind: input, shape index: {}]
  %s3 = inlined_call_operand.vmem [shape: f32[1,256], index: 3, kind: input, shape index: {}]
  %s4 = inlined_call_operand.vmem [shape: f32[2,256], index: 4, kind: output, shape index: {0}]
  %s5 = inlined_call_operand.vmem [shape: f32[2,256], index: 5, kind: output, shape index: {1}]
  %6 = xla_tuple %s4, %s5
  %s7 = sld [smem:[#allocation0]]
  $region34: #{mypsp_forward.5} parent=0
    _
  %s9 = ssub.s32 1, %s7
  %s10 = scalar_select 0, %s9, %s7
  // Predicated region
  $region2: #{mypsp_forward.5} parent=0 // pred_check
    _
  $region3: #{mypsp_forward.5} parent=0 // pred_check_branch
    %12 = sbr.rel (0) target = $region5
  $region4: #{mypsp_forward.5} parent=0 // pred_region
    _
  $region5: #{mypsp_forward.5} parent=0 // pred_fallthru
    _
  // Predicated region
  $region6: #{mypsp_forward.5} parent=0 // pred_check
    _
  $region7: #{mypsp_forward.5} parent=0 // pred_check_branch
    %14 = sbr.rel (0) target = $region9
  $region8: #{mypsp_forward.5} parent=0 // pred_region
    _
  $region9: #{mypsp_forward.5} parent=0 // pred_fallthru
    _
  // Predicated region
  $region10: #{mypsp_forward.5} parent=0 // pred_check
    _
  $region11: #{mypsp_forward.5} parent=0 // pred_check_branch
    %16 = sbr.rel (0) target = $region13
  $region12: #{mypsp_forward.5} parent=0 // pred_region
    _
  $region13: #{mypsp_forward.5} parent=0 // pred_fallthru
    _
  // Predicated region
  $region14: #{mypsp_forward.5} parent=0 // pred_check
    _
  $region15: #{mypsp_forward.5} parent=0 // pred_check_branch
    %18 = sbr.rel (0) target = $region17
  $region16: #{mypsp_forward.5} parent=0 // pred_region
    _
  $region17: #{mypsp_forward.5} parent=0 // pred_fallthru
    _
  %v19 = vld [vmem:[%s0] sm:$0xf]
  %v20 = vld [vmem:[%s1] sm:$0xff]
  %v21 = vld [vmem:[%s1 + $0x8] sm:$0xff]
  %v22 = vld [vmem:[%s1 + $0x10] sm:$0xff]
  %v23 = vld [vmem:[%s1 + $0x18] sm:$0xff]
  %v24 = vld [vmem:[%s1 + $0x20] sm:$0xff]
  %v25 = vld [vmem:[%s1 + $0x28] sm:$0xff]
  %v26 = vld [vmem:[%s1 + $0x30] sm:$0xff]
  %v27 = vld [vmem:[%s1 + $0x38] sm:$0xff]
  %v28 = vld [vmem:[%s1 + $0x40] sm:$0xff]
  %v29 = vld [vmem:[%s1 + $0x48] sm:$0xff]
  %v30 = vld [vmem:[%s1 + $0x50] sm:$0xff]
  %v31 = vld [vmem:[%s1 + $0x58] sm:$0xff]
  %v32 = vld [vmem:[%s1 + $0x60] sm:$0xff]
  %v33 = vld [vmem:[%s1 + $0x68] sm:$0xff]
  %v34 = vld [vmem:[%s1 + $0x70] sm:$0xff]
  %v35 = vld [vmem:[%s1 + $0x78] sm:$0xff]
  %v36 = vld [vmem:[%s1 + $0x80] sm:$0xff]
  %v37 = vld [vmem:[%s1 + $0x88] sm:$0xff]
  %v38 = vld [vmem:[%s1 + $0x90] sm:$0xff]
  %v39 = vld [vmem:[%s1 + $0x98] sm:$0xff]
  %v40 = vld [vmem:[%s1 + $0xa0] sm:$0xff]
  %v41 = vld [vmem:[%s1 + $0xa8] sm:$0xff]
  %v42 = vld [vmem:[%s1 + $0xb0] sm:$0xff]
  %v43 = vld [vmem:[%s1 + $0xb8] sm:$0xff]
  %v44 = vld [vmem:[%s1 + $0xc0] sm:$0xff]
  %v45 = vld [vmem:[%s1 + $0xc8] sm:$0xff]
  %v46 = vld [vmem:[%s1 + $0xd0] sm:$0xff]
  %v47 = vld [vmem:[%s1 + $0xd8] sm:$0xff]
  %v48 = vld [vmem:[%s1 + $0xe0] sm:$0xff]
  %v49 = vld [vmem:[%s1 + $0xe8] sm:$0xff]
  %v50 = vld [vmem:[%s1 + $0xf0] sm:$0xff]
  %v51 = vld [vmem:[%s1 + $0xf8] sm:$0xff]
  %v52 = vunpack.c.l.s8.bf16 %v20
  %v53 = vunpack.c.l.s8.bf16 %v21
  %v54 = vunpack.c.h.s8.bf16 %v20
  %v55 = vunpack.c.h.s8.bf16 %v21
  %v56 = vunpack.c.l.s8.bf16 %v22
  %v57 = vunpack.c.l.s8.bf16 %v23
  %v58 = vunpack.c.h.s8.bf16 %v22
  %v59 = vunpack.c.h.s8.bf16 %v23
  %v60 = vunpack.c.l.s8.bf16 %v24
  %v61 = vunpack.c.l.s8.bf16 %v25
  %v62 = vunpack.c.h.s8.bf16 %v24
  %v63 = vunpack.c.h.s8.bf16 %v25
  %v64 = vunpack.c.l.s8.bf16 %v26
  %v65 = vunpack.c.l.s8.bf16 %v27
  %v66 = vunpack.c.h.s8.bf16 %v26
  %v67 = vunpack.c.h.s8.bf16 %v27
  %v68 = vunpack.c.l.s8.bf16 %v28
  %v69 = vunpack.c.l.s8.bf16 %v29
  %v70 = vunpack.c.h.s8.bf16 %v28
  %v71 = vunpack.c.h.s8.bf16 %v29
  %v72 = vunpack.c.l.s8.bf16 %v30
  %v73 = vunpack.c.l.s8.bf16 %v31
  %v74 = vunpack.c.h.s8.bf16 %v30
  %v75 = vunpack.c.h.s8.bf16 %v31
  %v76 = vunpack.c.l.s8.bf16 %v32
  %v77 = vunpack.c.l.s8.bf16 %v33
  %v78 = vunpack.c.h.s8.bf16 %v32
  %v79 = vunpack.c.h.s8.bf16 %v33
  %v80 = vunpack.c.l.s8.bf16 %v34
  %v81 = vunpack.c.l.s8.bf16 %v35
  %v82 = vunpack.c.h.s8.bf16 %v34
  %v83 = vunpack.c.h.s8.bf16 %v35
  %v84 = vunpack.c.l.s8.bf16 %v36
  %v85 = vunpack.c.l.s8.bf16 %v37
  %v86 = vunpack.c.h.s8.bf16 %v36
  %v87 = vunpack.c.h.s8.bf16 %v37
  %v88 = vunpack.c.l.s8.bf16 %v38
  %v89 = vunpack.c.l.s8.bf16 %v39
  %v90 = vunpack.c.h.s8.bf16 %v38
  %v91 = vunpack.c.h.s8.bf16 %v39
  %v92 = vunpack.c.l.s8.bf16 %v40
  %v93 = vunpack.c.l.s8.bf16 %v41
  %v94 = vunpack.c.h.s8.bf16 %v40
  %v95 = vunpack.c.h.s8.bf16 %v41
  %v96 = vunpack.c.l.s8.bf16 %v42
  %v97 = vunpack.c.l.s8.bf16 %v43
  %v98 = vunpack.c.h.s8.bf16 %v42
  %v99 = vunpack.c.h.s8.bf16 %v43
  %v100 = vunpack.c.l.s8.bf16 %v44
  %v101 = vunpack.c.l.s8.bf16 %v45
  %v102 = vunpack.c.h.s8.bf16 %v44
  %v103 = vunpack.c.h.s8.bf16 %v45
  %v104 = vunpack.c.l.s8.bf16 %v46
  %v105 = vunpack.c.l.s8.bf16 %v47
  %v106 = vunpack.c.h.s8.bf16 %v46
  %v107 = vunpack.c.h.s8.bf16 %v47
  %v108 = vunpack.c.l.s8.bf16 %v48
  %v109 = vunpack.c.l.s8.bf16 %v49
  %v110 = vunpack.c.h.s8.bf16 %v48
  %v111 = vunpack.c.h.s8.bf16 %v49
  %v112 = vunpack.c.l.s8.bf16 %v50
  %v113 = vunpack.c.l.s8.bf16 %v51
  %v114 = vunpack.c.h.s8.bf16 %v50
  %v115 = vunpack.c.h.s8.bf16 %v51
  %v118 = vunpack.c.l.s4 1966171168
  %v119 = vunpack.c.0.s8 %v118
  %v120 = vlaneseq
  %v121 = vshrl.u32 %v120, 7
  %v122 = vsub.s32 %v119, %v121
  %v123 = vrot.slane %v19, %v122
  %v124 = vcombine.high %v123, %v123
  %v126 = vunpack.c.l.s4 1966171168
  %v127 = vunpack.c.0.s8 %v126
  %v128 = vlaneseq
  %v129 = vshrl.u32 %v128, 7
  %v130 = vsub.s32 %v127, %v129
  %v131 = vrot.slane %v123, %v130
  %v133 = vunpack.c.l.s4 1966171168
  %v134 = vunpack.c.0.s8 %v133
  %v135 = vlaneseq
  %v136 = vshrl.u32 %v135, 7
  %v137 = vsub.s32 %v134, %v136
  %v138 = vrot.slane %v124, %v137
  %v139 = vcombine.high %v131, %v131
  %v140 = vcombine.high %v138, %v138
  %145 = vmatprep.subr.bf16.mxu0 %v53
  %146 = vmatpush1.bf16.msra.mxu0 %v52
  %147 = vmatprep.subr.bf16.mxu0 %v55
  %148 = vmatpush1.bf16.msra.mxu0 %v54
  %149 = vmatprep.subr.bf16.mxu0 %v57
  %150 = vmatpush1.bf16.msra.mxu0 %v56
  %151 = vmatprep.subr.bf16.mxu0 %v59
  %152 = vmatpush1.bf16.msra.mxu0 %v58
  %153 = vmatprep.subr.bf16.mxu0 %v61
  %154 = vmatpush1.bf16.msra.mxu0 %v60
  %155 = vmatprep.subr.bf16.mxu0 %v63
  %156 = vmatpush1.bf16.msra.mxu0 %v62
  %157 = vmatprep.subr.bf16.mxu0 %v65
  %158 = vmatpush1.bf16.msra.mxu0 %v64
  %159 = vmatprep.subr.bf16.mxu0 %v67
  %160 = vmatpush1.bf16.msra.mxu0 %v66
  %161 = vmatprep.subr.bf16.mxu0 %v69
  %162 = vmatpush1.bf16.msra.mxu0 %v68
  %163 = vmatprep.subr.bf16.mxu0 %v71
  %164 = vmatpush1.bf16.msra.mxu0 %v70
  %165 = vmatprep.subr.bf16.mxu0 %v73
  %166 = vmatpush1.bf16.msra.mxu0 %v72
  %167 = vmatprep.subr.bf16.mxu0 %v75
  %168 = vmatpush1.bf16.msra.mxu0 %v74
  %169 = vmatprep.subr.bf16.mxu0 %v77
  %170 = vmatpush1.bf16.msra.mxu0 %v76
  %171 = vmatprep.subr.bf16.mxu0 %v79
  %172 = vmatpush1.bf16.msra.mxu0 %v78
  %173 = vmatprep.subr.bf16.mxu0 %v81
  %174 = vmatpush1.bf16.msra.mxu0 %v80
  %175 = vmatprep.subr.bf16.mxu0 %v83
  %176 = vmatpush1.bf16.msra.mxu0 %v82
  %177 = vmatprep.mubr.bf16.mxu0 %v138
  %178 = vmatmul.mubr.bf16.gmra.mrb[0].mxu0 %v131
  %v179 = vpop.f32.mrb[0].mxu0
  %v180 = vadd.f32 0.0, %v179
  %v181 = vpop.f32.mrb[0].mxu0
  %v182 = vadd.f32 0.0, %v181
  %v183 = vpop.f32.mrb[0].mxu0
  %v184 = vpop.f32.mrb[0].mxu0
  %185 = vdwg.mxu0
  %186 = vmatprep.subr.bf16.mxu0 %v85
  %187 = vmatpush1.bf16.msra.mxu0 %v84
  %188 = vmatprep.subr.bf16.mxu0 %v87
  %189 = vmatpush1.bf16.msra.mxu0 %v86
  %190 = vmatprep.subr.bf16.mxu0 %v89
  %191 = vmatpush1.bf16.msra.mxu0 %v88
  %192 = vmatprep.subr.bf16.mxu0 %v91
  %193 = vmatpush1.bf16.msra.mxu0 %v90
  %194 = vmatprep.subr.bf16.mxu0 %v93
  %195 = vmatpush1.bf16.msra.mxu0 %v92
  %196 = vmatprep.subr.bf16.mxu0 %v95
  %197 = vmatpush1.bf16.msra.mxu0 %v94
  %198 = vmatprep.subr.bf16.mxu0 %v97
  %199 = vmatpush1.bf16.msra.mxu0 %v96
  %200 = vmatprep.subr.bf16.mxu0 %v99
  %201 = vmatpush1.bf16.msra.mxu0 %v98
  %202 = vmatprep.subr.bf16.mxu0 %v101
  %203 = vmatpush1.bf16.msra.mxu0 %v100
  %204 = vmatprep.subr.bf16.mxu0 %v103
  %205 = vmatpush1.bf16.msra.mxu0 %v102
  %206 = vmatprep.subr.bf16.mxu0 %v105
  %207 = vmatpush1.bf16.msra.mxu0 %v104
  %208 = vmatprep.subr.bf16.mxu0 %v107
  %209 = vmatpush1.bf16.msra.mxu0 %v106
  %210 = vmatprep.subr.bf16.mxu0 %v109
  %211 = vmatpush1.bf16.msra.mxu0 %v108
  %212 = vmatprep.subr.bf16.mxu0 %v111
  %213 = vmatpush1.bf16.msra.mxu0 %v110
  %214 = vmatprep.subr.bf16.mxu0 %v113
  %215 = vmatpush1.bf16.msra.mxu0 %v112
  %216 = vmatprep.subr.bf16.mxu0 %v115
  %217 = vmatpush1.bf16.msra.mxu0 %v114
  %218 = vmatprep.mubr.bf16.mxu0 %v140
  %219 = vmatmul.mubr.bf16.gmra.mrb[0].mxu0 %v139
  %v220 = vpop.f32.mrb[0].mxu0
  %v221 = vadd.f32 %v180, %v220
  %v222 = vpop.f32.mrb[0].mxu0
  %v223 = vadd.f32 %v182, %v222
  %v224 = vpop.f32.mrb[0].mxu0
  %v225 = vpop.f32.mrb[0].mxu0
  %226 = vdwg.mxu0
  %v227 = vld [vmem:[%s2] sm:$0x3]
  %v229 = vlaneseq
  %v230 = vshrl.u32 %v229, 7
  %v231 = vsub.s32 0, %v230
  %v232 = vrot.slane %v227, %v231
  %v233 = vlaneseq
  %v234 = vshrl.u32 %v233, 7
  %v235 = vsub.s32 1, %v234
  %v236 = vrot.slane %v227, %v235
  %v239 = vmul.f32 %v221, %v232
  %v240 = vmul.f32 %v223, %v236
  %v241 = vld [vmem:[%s3] sm:$0x3]
  %v243 = vlaneseq
  %v244 = vshrl.u32 %v243, 7
  %v245 = vsub.s32 0, %v244
  %v246 = vrot.slane %v241, %v245
  %v247 = vlaneseq
  %v248 = vshrl.u32 %v247, 7
  %v249 = vsub.s32 1, %v248
  %v250 = vrot.slane %v241, %v249
  %v253 = vadd.f32 %v239, %v246
  %v254 = vadd.f32 %v240, %v250
  %v257 = vcombine.low %v253, %v254
  %v259 = vunpack.c.l.s4 1983009808
  %v260 = vunpack.c.0.s8 %v259
  %v261 = vlaneseq
  %v262 = vshrl.u32 %v261, 7
  %v263 = vsub.s32 %v260, %v262
  %v264 = vrot.slane %v257, %v263
  %266 = vst [vmem:[%s4] sm:$0xf] %v264
  %vm267 = vcmp.gt.f32.partialorder %v253, 0.0
  %vm268 = vcmp.gt.f32.partialorder %v254, 0.0
  %v269 = vsel %vm267, 1, 0
  %v270 = vsel %vm268, 1, 0
  %v271 = vcvt.s32.f32 %v269
  %v272 = vcvt.s32.f32 %v270
  %v275 = vcombine.low %v271, %v272
  %v277 = vunpack.c.l.s4 1983009808
  %v278 = vunpack.c.0.s8 %v277
  %v279 = vlaneseq
  %v280 = vshrl.u32 %v279, 7
  %v281 = vsub.s32 %v278, %v280
  %v282 = vrot.slane %v275, %v281
  %284 = vst [vmem:[%s5] sm:$0xf] %v282
  // Predicated region
  $region18: #{mypsp_forward.5} parent=0 // pred_check
    _
  $region19: #{mypsp_forward.5} parent=0 // pred_check_branch
    %286 = sbr.rel (0) target = $region21
  $region20: #{mypsp_forward.5} parent=0 // pred_region
    _
  $region21: #{mypsp_forward.5} parent=0 // pred_fallthru
    _
  // Predicated region
  $region22: #{mypsp_forward.5} parent=0 // pred_check
    _
  $region23: #{mypsp_forward.5} parent=0 // pred_check_branch
    %288 = sbr.rel (0) target = $region25
  $region24: #{mypsp_forward.5} parent=0 // pred_region
    _
  $region25: #{mypsp_forward.5} parent=0 // pred_fallthru
    _
  // Predicated region
  $region26: #{mypsp_forward.5} parent=0 // pred_check
    _
  $region27: #{mypsp_forward.5} parent=0 // pred_check_branch
    %290 = sbr.rel (0) target = $region29
  $region28: #{mypsp_forward.5} parent=0 // pred_region
    _
  $region29: #{mypsp_forward.5} parent=0 // pred_fallthru
    _
  // Predicated region
  $region30: #{mypsp_forward.5} parent=0 // pred_check
    _
  $region31: #{mypsp_forward.5} parent=0 // pred_check_branch
    %292 = sbr.rel (0) target = $region33
  $region32: #{mypsp_forward.5} parent=0 // pred_region
    _
  $region33: #{mypsp_forward.5} parent=0 // pred_fallthru
    _

</llo_original>
